<compile_context>
chip_gen: v6e
topology: v6e:2x2x1
jax: 0.10.0
libtpu: 0.0.40
codegen_flags: <defaults>
</compile_context>

<pallas_src>
import jax
import jax.numpy as jnp
from jax import lax
from jax.experimental import pallas as pl
from jax.experimental.pallas import tpu as pltpu

NEG_PAD = -1e30  # bias value for padded vocab lanes -> exp() underflows to 0


def ngram_kernel(idx_ref, emb_bd_ref, w1_ref, b1_ref, w2_ref, b2_ref, out_ref):
    # idx_ref   : VMEM (TB, S)      int32   token indices for this batch tile
    # emb_bd_ref: VMEM (S*V, S*E)   f32     block-diagonal embedding table
    # w1_ref    : VMEM (S*E, H)     f32
    # b1_ref    : VMEM (1, H)       f32
    # w2_ref    : VMEM (H, Vp)      f32     vocab axis zero-padded to Vp (lane multiple)
    # b2_ref    : VMEM (1, Vp)      f32     padded lanes hold NEG_PAD
    # out_ref   : VMEM (TB, Vp)     f32     lane-dense log-prob tile
    TB, S = idx_ref.shape
    SV = emb_bd_ref.shape[0]
    V = SV // S

    # Wide multi-hot: onehot[b, s*V + v] = 1  iff  idx[b, s] == v.
    # Built with S independent lane-broadcast compares (pure VPU work; no MXU
    # dependence chain, no dynamic sublane slices).
    idx = idx_ref[...]                                         # (TB, S) int32
    col = lax.broadcasted_iota(jnp.int32, (TB, SV), 1)         # lane ids 0..S*V-1
    onehot = jnp.zeros((TB, SV), jnp.float32)
    for s in range(S):                                         # static, S small
        onehot = onehot + (col == (idx[:, s:s + 1] + s * V)).astype(jnp.float32)

    # Gather + flatten in ONE MXU matmul:
    #   embeds[b, t*E + e] = emb[idx[b, t], e]      (matches .view(1, -1) order)
    embeds = jnp.dot(onehot, emb_bd_ref[...],
                     preferred_element_type=jnp.float32)       # (TB, S*E)

    # Layer 1 (single K=128 matmul) + ReLU.
    h = jnp.maximum(
        jnp.dot(embeds, w1_ref[...], preferred_element_type=jnp.float32)
        + b1_ref[...], 0.0)                                    # (TB, H)

    # Layer 2 on the lane-padded vocab axis.
    logits = jnp.dot(h, w2_ref[...],
                     preferred_element_type=jnp.float32) + b2_ref[...]  # (TB, Vp)

    # log_softmax along the vocab axis (pad lanes contribute exp(NEG_PAD)=0).
    m = jnp.max(logits, axis=1, keepdims=True)
    shifted = logits - m
    lse = jnp.log(jnp.sum(jnp.exp(shifted), axis=1, keepdims=True))
    out_ref[...] = (shifted - lse).astype(out_ref.dtype)


def ngram_forward(indices, emb_table, w1, b1, w2, b2, *, block_b=128):
    """Batched forward. indices: (B, S) int32; emb_table: (V, E); w1: (S*E, H);
    b1: (H,); w2: (H, V); b2: (V,).  Returns (B, V) log-probs (row b is the
    module's forward for sample b)."""
    B, S = indices.shape
    V, E = emb_table.shape
    H = w1.shape[1]
    Vp = max(128, ((V + 127) // 128) * 128)          # lane-dense vocab padding

    # Pad the batch to a multiple of the tile (padded rows use index 0, sliced off).
    Bp = ((B + block_b - 1) // block_b) * block_b
    idx_p = indices if Bp == B else jnp.zeros((Bp, S), jnp.int32).at[:B].set(indices)

    # Pure layout prep (no extra math): block-diagonal embedding table so the
    # in-kernel one-hot matmul performs gather + flatten in one shot.
    emb_bd = jnp.kron(jnp.eye(S, dtype=emb_table.dtype), emb_table)   # (S*V, S*E)
    b1_2d = b1.reshape(1, H)
    w2_p = jnp.zeros((H, Vp), w2.dtype).at[:, :V].set(w2)
    b2_p = jnp.full((1, Vp), NEG_PAD, dtype=jnp.float32).at[0, :V].set(b2)

    nb = Bp // block_b
    out = pl.pallas_call(
        ngram_kernel,
        out_shape=jax.ShapeDtypeStruct((Bp, Vp), jnp.float32),
        grid_spec=pltpu.PrefetchScalarGridSpec(
            num_scalar_prefetch=0,
            grid=(nb,),
            in_specs=[
                pl.BlockSpec((block_b, S), lambda i: (i, 0)),   # indices tile
                pl.BlockSpec((S * V, S * E), lambda i: (0, 0)), # emb (block-diag), resident
                pl.BlockSpec((S * E, H), lambda i: (0, 0)),     # w1, resident
                pl.BlockSpec((1, H), lambda i: (0, 0)),         # b1
                pl.BlockSpec((H, Vp), lambda i: (0, 0)),        # w2 (lane padded)
                pl.BlockSpec((1, Vp), lambda i: (0, 0)),        # b2 (lane padded)
            ],
            out_specs=pl.BlockSpec((block_b, Vp), lambda i: (i, 0)),
        ),
        compiler_params=pltpu.CompilerParams(
            dimension_semantics=("parallel",)),
    )(idx_p, emb_bd, w1, b1_2d, w2_p, b2_p)

    return out[:B, :V]


def ngram_reference(indices, emb_table, w1, b1, w2, b2):
    B = indices.shape[0]
    embeds = emb_table[indices].reshape(B, -1)
    h = jnp.maximum(embeds @ w1 + b1[None, :], 0.0)
    logits = h @ w2 + b2[None, :]
    return jax.nn.log_softmax(logits, axis=-1)


if __name__ == "__main__":
    vocab_size = 32
    embedding_dim = 16
    sample_size = 8
    hidden = 128
    batch = 256           # batched throughput path: 2 parallel grid tiles of 128

    key = jax.random.PRNGKey(0)
    k_emb, k_w1, k_b1, k_w2, k_b2, k_idx = jax.random.split(key, 6)

    # Deterministic synthetic parameters (shapes from nn.Module __init__;
    # linears stored input-major, i.e. transposed vs. PyTorch weight layout).
    emb_table = jax.random.normal(k_emb, (vocab_size, embedding_dim), jnp.float32)
    fan1 = sample_size * embedding_dim
    w1 = jax.random.uniform(k_w1, (fan1, hidden), jnp.float32,
                            -1.0 / jnp.sqrt(fan1), 1.0 / jnp.sqrt(fan1))
    b1 = jax.random.uniform(k_b1, (hidden,), jnp.float32,
                            -1.0 / jnp.sqrt(fan1), 1.0 / jnp.sqrt(fan1))
    w2 = jax.random.uniform(k_w2, (hidden, vocab_size), jnp.float32,
                            -1.0 / jnp.sqrt(hidden), 1.0 / jnp.sqrt(hidden))
    b2 = jax.random.uniform(k_b2, (vocab_size,), jnp.float32,
                            -1.0 / jnp.sqrt(hidden), 1.0 / jnp.sqrt(hidden))

    indices = jax.random.randint(k_idx, (batch, sample_size), 0, vocab_size, jnp.int32)

    # Batched run.
    log_probs = ngram_forward(indices, emb_table, w1, b1, w2, b2)
    jax.block_until_ready(log_probs)
    ref = ngram_reference(indices, emb_table, w1, b1, w2, b2)
    assert log_probs.shape == (batch, vocab_size)
    assert jnp.allclose(log_probs, ref, atol=1e-4, rtol=1e-4), (
        f"max abs err {jnp.max(jnp.abs(log_probs - ref))}")

    # Single-sample run (the original module's forward), exercises batch padding.
    lp1 = ngram_forward(indices[:1], emb_table, w1, b1, w2, b2)
    jax.block_until_ready(lp1)
    ref1 = ngram_reference(indices[:1], emb_table, w1, b1, w2, b2)
    assert lp1.shape == (1, vocab_size)
    assert jnp.allclose(lp1, ref1, atol=1e-4, rtol=1e-4), (
        f"max abs err {jnp.max(jnp.abs(lp1 - ref1))}")

    print("KERNEL_OK")
</pallas_src>

<mosaic_0001>
module attributes {stable_mosaic.version = 11 : i64} {
  func.func @ngram_kernel(%arg0: i32, %arg1: memref<128x8xi32, #tpu.memory_space<vmem>>, %arg2: memref<256x128xf32, #tpu.memory_space<vmem>>, %arg3: memref<128x128xf32, #tpu.memory_space<vmem>>, %arg4: memref<1x128xf32, #tpu.memory_space<vmem>>, %arg5: memref<128x128xf32, #tpu.memory_space<vmem>>, %arg6: memref<1x128xf32, #tpu.memory_space<vmem>>, %arg7: memref<128x128xf32, #tpu.memory_space<vmem>>) attributes {dimension_semantics = [#tpu.dimension_semantics<parallel>], iteration_bounds = array<i64: 2>, scalar_prefetch = 0 : i64, scratch_operands = 0 : i64, tpu.core_type = #tpu.core_type<tc>, window_params = [{transform_indices = @transform_0, window_bounds = array<i64: 128, 8>}, {pipeline_mode = #tpu.pipeline_mode<synchronous>, transform_indices = @transform_1, window_bounds = array<i64: 256, 128>}, {pipeline_mode = #tpu.pipeline_mode<synchronous>, transform_indices = @transform_2, window_bounds = array<i64: 128, 128>}, {pipeline_mode = #tpu.pipeline_mode<synchronous>, transform_indices = @transform_3, window_bounds = array<i64: 1, 128>}, {pipeline_mode = #tpu.pipeline_mode<synchronous>, transform_indices = @transform_4, window_bounds = array<i64: 128, 128>}, {pipeline_mode = #tpu.pipeline_mode<synchronous>, transform_indices = @transform_5, window_bounds = array<i64: 1, 128>}, {transform_indices = @transform_6, window_bounds = array<i64: 128, 128>}]} {
    %c0 = arith.constant 0 : index
    %c0_0 = arith.constant 0 : index
    %0 = vector.load %arg1[%c0, %c0_0] : memref<128x8xi32, #tpu.memory_space<vmem>>, vector<128x8xi32>
    %1 = tpu.iota {dimensions = array<i32: 1>} : vector<128x256xi32>
    %cst = arith.constant 0.000000e+00 : f32
    %2 = vector.broadcast %cst : f32 to vector<128x256xf32>
    %3 = vector.extract_strided_slice %0 {offsets = [0, 0], sizes = [128, 1], strides = [1, 1]} : vector<128x8xi32> to vector<128x1xi32>
    %c0_i32 = arith.constant 0 : i32
    %4 = vector.broadcast %c0_i32 : i32 to vector<128x1xi32>
    %5 = arith.addi %3, %4 : vector<128x1xi32>
    %6 = vector.broadcast %5 : vector<128x1xi32> to vector<128x256xi32>
    %7 = arith.cmpi eq, %1, %6 : vector<128x256xi32>
    %8 = arith.extui %7 : vector<128x256xi1> to vector<128x256xi32>
    %9 = arith.sitofp %8 : vector<128x256xi32> to vector<128x256xf32>
    %10 = arith.addf %2, %9 : vector<128x256xf32>
    %11 = vector.extract_strided_slice %0 {offsets = [0, 1], sizes = [128, 1], strides = [1, 1]} : vector<128x8xi32> to vector<128x1xi32>
    %c32_i32 = arith.constant 32 : i32
    %12 = vector.broadcast %c32_i32 : i32 to vector<128x1xi32>
    %13 = arith.addi %11, %12 : vector<128x1xi32>
    %14 = vector.broadcast %13 : vector<128x1xi32> to vector<128x256xi32>
    %15 = arith.cmpi eq, %1, %14 : vector<128x256xi32>
    %16 = arith.extui %15 : vector<128x256xi1> to vector<128x256xi32>
    %17 = arith.sitofp %16 : vector<128x256xi32> to vector<128x256xf32>
    %18 = arith.addf %10, %17 : vector<128x256xf32>
    %19 = vector.extract_strided_slice %0 {offsets = [0, 2], sizes = [128, 1], strides = [1, 1]} : vector<128x8xi32> to vector<128x1xi32>
    %c64_i32 = arith.constant 64 : i32
    %20 = vector.broadcast %c64_i32 : i32 to vector<128x1xi32>
    %21 = arith.addi %19, %20 : vector<128x1xi32>
    %22 = vector.broadcast %21 : vector<128x1xi32> to vector<128x256xi32>
    %23 = arith.cmpi eq, %1, %22 : vector<128x256xi32>
    %24 = arith.extui %23 : vector<128x256xi1> to vector<128x256xi32>
    %25 = arith.sitofp %24 : vector<128x256xi32> to vector<128x256xf32>
    %26 = arith.addf %18, %25 : vector<128x256xf32>
    %27 = vector.extract_strided_slice %0 {offsets = [0, 3], sizes = [128, 1], strides = [1, 1]} : vector<128x8xi32> to vector<128x1xi32>
    %c96_i32 = arith.constant 96 : i32
    %28 = vector.broadcast %c96_i32 : i32 to vector<128x1xi32>
    %29 = arith.addi %27, %28 : vector<128x1xi32>
    %30 = vector.broadcast %29 : vector<128x1xi32> to vector<128x256xi32>
    %31 = arith.cmpi eq, %1, %30 : vector<128x256xi32>
    %32 = arith.extui %31 : vector<128x256xi1> to vector<128x256xi32>
    %33 = arith.sitofp %32 : vector<128x256xi32> to vector<128x256xf32>
    %34 = arith.addf %26, %33 : vector<128x256xf32>
    %35 = vector.extract_strided_slice %0 {offsets = [0, 4], sizes = [128, 1], strides = [1, 1]} : vector<128x8xi32> to vector<128x1xi32>
    %c128_i32 = arith.constant 128 : i32
    %36 = vector.broadcast %c128_i32 : i32 to vector<128x1xi32>
    %37 = arith.addi %35, %36 : vector<128x1xi32>
    %38 = vector.broadcast %37 : vector<128x1xi32> to vector<128x256xi32>
    %39 = arith.cmpi eq, %1, %38 : vector<128x256xi32>
    %40 = arith.extui %39 : vector<128x256xi1> to vector<128x256xi32>
    %41 = arith.sitofp %40 : vector<128x256xi32> to vector<128x256xf32>
    %42 = arith.addf %34, %41 : vector<128x256xf32>
    %43 = vector.extract_strided_slice %0 {offsets = [0, 5], sizes = [128, 1], strides = [1, 1]} : vector<128x8xi32> to vector<128x1xi32>
    %c160_i32 = arith.constant 160 : i32
    %44 = vector.broadcast %c160_i32 : i32 to vector<128x1xi32>
    %45 = arith.addi %43, %44 : vector<128x1xi32>
    %46 = vector.broadcast %45 : vector<128x1xi32> to vector<128x256xi32>
    %47 = arith.cmpi eq, %1, %46 : vector<128x256xi32>
    %48 = arith.extui %47 : vector<128x256xi1> to vector<128x256xi32>
    %49 = arith.sitofp %48 : vector<128x256xi32> to vector<128x256xf32>
    %50 = arith.addf %42, %49 : vector<128x256xf32>
    %51 = vector.extract_strided_slice %0 {offsets = [0, 6], sizes = [128, 1], strides = [1, 1]} : vector<128x8xi32> to vector<128x1xi32>
    %c192_i32 = arith.constant 192 : i32
    %52 = vector.broadcast %c192_i32 : i32 to vector<128x1xi32>
    %53 = arith.addi %51, %52 : vector<128x1xi32>
    %54 = vector.broadcast %53 : vector<128x1xi32> to vector<128x256xi32>
    %55 = arith.cmpi eq, %1, %54 : vector<128x256xi32>
    %56 = arith.extui %55 : vector<128x256xi1> to vector<128x256xi32>
    %57 = arith.sitofp %56 : vector<128x256xi32> to vector<128x256xf32>
    %58 = arith.addf %50, %57 : vector<128x256xf32>
    %59 = vector.extract_strided_slice %0 {offsets = [0, 7], sizes = [128, 1], strides = [1, 1]} : vector<128x8xi32> to vector<128x1xi32>
    %c224_i32 = arith.constant 224 : i32
    %60 = vector.broadcast %c224_i32 : i32 to vector<128x1xi32>
    %61 = arith.addi %59, %60 : vector<128x1xi32>
    %62 = vector.broadcast %61 : vector<128x1xi32> to vector<128x256xi32>
    %63 = arith.cmpi eq, %1, %62 : vector<128x256xi32>
    %64 = arith.extui %63 : vector<128x256xi1> to vector<128x256xi32>
    %65 = arith.sitofp %64 : vector<128x256xi32> to vector<128x256xf32>
    %66 = arith.addf %58, %65 : vector<128x256xf32>
    %c0_1 = arith.constant 0 : index
    %c0_2 = arith.constant 0 : index
    %67 = vector.load %arg2[%c0_1, %c0_2] : memref<256x128xf32, #tpu.memory_space<vmem>>, vector<256x128xf32>
    %cst_3 = arith.constant dense<0.000000e+00> : vector<128x128xf32>
    %68 = tpu.matmul %66, %67, %cst_3 {dimension_numbers = #tpu.dot_dimension_numbers<[1], [0], [0], [1], [0, 0, 1, 1], [], []>} : vector<128x256xf32>, vector<256x128xf32>, vector<128x128xf32> -> vector<128x128xf32>
    %c0_4 = arith.constant 0 : index
    %c0_5 = arith.constant 0 : index
    %69 = vector.load %arg3[%c0_4, %c0_5] : memref<128x128xf32, #tpu.memory_space<vmem>>, vector<128x128xf32>
    %cst_6 = arith.constant dense<0.000000e+00> : vector<128x128xf32>
    %70 = tpu.matmul %68, %69, %cst_6 {dimension_numbers = #tpu.dot_dimension_numbers<[1], [0], [0], [1], [0, 0, 1, 1], [], []>} : vector<128x128xf32>, vector<128x128xf32>, vector<128x128xf32> -> vector<128x128xf32>
    %c0_7 = arith.constant 0 : index
    %c0_8 = arith.constant 0 : index
    %71 = vector.load %arg4[%c0_7, %c0_8] : memref<1x128xf32, #tpu.memory_space<vmem>>, vector<1x128xf32>
    %72 = vector.broadcast %71 : vector<1x128xf32> to vector<128x128xf32>
    %73 = arith.addf %70, %72 : vector<128x128xf32>
    %cst_9 = arith.constant 0.000000e+00 : f32
    %74 = vector.broadcast %cst_9 : f32 to vector<128x128xf32>
    %75 = arith.maximumf %73, %74 : vector<128x128xf32>
    %c0_10 = arith.constant 0 : index
    %c0_11 = arith.constant 0 : index
    %76 = vector.load %arg5[%c0_10, %c0_11] : memref<128x128xf32, #tpu.memory_space<vmem>>, vector<128x128xf32>
    %cst_12 = arith.constant dense<0.000000e+00> : vector<128x128xf32>
    %77 = tpu.matmul %75, %76, %cst_12 {dimension_numbers = #tpu.dot_dimension_numbers<[1], [0], [0], [1], [0, 0, 1, 1], [], []>} : vector<128x128xf32>, vector<128x128xf32>, vector<128x128xf32> -> vector<128x128xf32>
    %c0_13 = arith.constant 0 : index
    %c0_14 = arith.constant 0 : index
    %78 = vector.load %arg6[%c0_13, %c0_14] : memref<1x128xf32, #tpu.memory_space<vmem>>, vector<1x128xf32>
    %79 = vector.broadcast %78 : vector<1x128xf32> to vector<128x128xf32>
    %80 = arith.addf %77, %79 : vector<128x128xf32>
    %cst_15 = arith.constant dense<0xFF800000> : vector<128xf32>
    %81 = vector.multi_reduction <maximumf>, %80, %cst_15 [1] : vector<128x128xf32> to vector<128xf32>
    %82 = vector.shape_cast %81 : vector<128xf32> to vector<128x1xf32>
    %83 = vector.broadcast %82 : vector<128x1xf32> to vector<128x128xf32>
    %84 = arith.subf %80, %83 : vector<128x128xf32>
    %85 = math.exp %84 : vector<128x128xf32>
    %cst_16 = arith.constant dense<0.000000e+00> : vector<128xf32>
    %86 = vector.multi_reduction <add>, %85, %cst_16 [1] : vector<128x128xf32> to vector<128xf32>
    %87 = vector.shape_cast %86 : vector<128xf32> to vector<128x1xf32>
    %88 = math.log %87 : vector<128x1xf32>
    %89 = vector.broadcast %88 : vector<128x1xf32> to vector<128x128xf32>
    %90 = arith.subf %84, %89 : vector<128x128xf32>
    %c0_17 = arith.constant 0 : index
    %c0_18 = arith.constant 0 : index
    %91 = vector.load %arg7[%c0_17, %c0_18] : memref<128x128xf32, #tpu.memory_space<vmem>>, vector<128x128xf32>
    tpu.vector_store %arg7[%c0_17, %c0_18], %90 {strides = array<i32>} : memref<128x128xf32, #tpu.memory_space<vmem>>, vector<128x128xf32>,
    return
  }
  func.func @transform_0(%arg0: i32) -> (i32, i32) {
    %c0_i32 = arith.constant 0 : i32
    %c0_i32_0 = arith.constant 0 : i32
    return %arg0, %c0_i32 : i32, i32
  }
  func.func @transform_1(%arg0: i32) -> (i32, i32) {
    %c0_i32 = arith.constant 0 : i32
    %c0_i32_0 = arith.constant 0 : i32
    %c0_i32_1 = arith.constant 0 : i32
    return %c0_i32, %c0_i32_0 : i32, i32
  }
  func.func @transform_2(%arg0: i32) -> (i32, i32) {
    %c0_i32 = arith.constant 0 : i32
    %c0_i32_0 = arith.constant 0 : i32
    %c0_i32_1 = arith.constant 0 : i32
    return %c0_i32, %c0_i32_0 : i32, i32
  }
  func.func @transform_3(%arg0: i32) -> (i32, i32) {
    %c0_i32 = arith.constant 0 : i32
    %c0_i32_0 = arith.constant 0 : i32
    %c0_i32_1 = arith.constant 0 : i32
    return %c0_i32, %c0_i32_0 : i32, i32
  }
  func.func @transform_4(%arg0: i32) -> (i32, i32) {
    %c0_i32 = arith.constant 0 : i32
    %c0_i32_0 = arith.constant 0 : i32
    %c0_i32_1 = arith.constant 0 : i32
    return %c0_i32, %c0_i32_0 : i32, i32
  }
  func.func @transform_5(%arg0: i32) -> (i32, i32) {
    %c0_i32 = arith.constant 0 : i32
    %c0_i32_0 = arith.constant 0 : i32
    %c0_i32_1 = arith.constant 0 : i32
    return %c0_i32, %c0_i32_0 : i32, i32
  }
  func.func @transform_6(%arg0: i32) -> (i32, i32) {
    %c0_i32 = arith.constant 0 : i32
    %c0_i32_0 = arith.constant 0 : i32
    return %arg0, %c0_i32 : i32, i32
  }
}

</mosaic_0001>

<llo_original>
// kernel: tpu_custom_call.1
$region0: #{tpu_custom_call.1}
  #allocation0 [shape = 'u32[]', space=smem, size = 0x4, offset = 0x4, fixed_abs, tag = 'smem constant byte address 0x4 - core index']
  #allocation1 [shape = 'u32[144,128]{1,0:T(1,128)}', space=vmem, size = 0x12000, scoped, tag = 'internal scratch']
  %s0 = inlined_call_operand.vmem [shape: s32[256,8], index: 0, kind: input, shape index: {}]
  %s1 = inlined_call_operand.vmem [shape: f32[256,128], index: 1, kind: input, shape index: {}]
  %s2 = inlined_call_operand.hbm [shape: f32[128,128], index: 2, kind: input, shape index: {}]
  %s3 = inlined_call_operand.vmem [shape: f32[1,128], index: 3, kind: input, shape index: {}]
  %s4 = inlined_call_operand.hbm [shape: f32[128,128], index: 4, kind: input, shape index: {}]
  %s5 = inlined_call_operand.vmem [shape: f32[1,128], index: 5, kind: input, shape index: {}]
  %s6 = inlined_call_operand.hbm [shape: f32[256,128], index: 6, kind: output, shape index: {}]
  %s7 = sld [smem:[#allocation0]]
  $region65: #{tpu_custom_call.1} parent=0
    _
  %s9 = ssub.s32 1, %s7
  %s10 = scalar_select 0, %s9, %s7
  $region1: #{tpu_custom_call.1} parent=0
    #allocation2 [shape = 'u8[65536]{0}', space=vmem, size = 0x10000, scoped, tag = 'input window, operand 2, single buffered']
    #allocation3 [shape = 's32[2]{0}', space=sflag, size = 0x8, scoped, tag = 'scoped memory for tpu_custom_call.1']
    #allocation4 [shape = 's32[2]{0}', space=sflag, size = 0x8, scoped, tag = 'scoped memory for tpu_custom_call.1']
    #allocation5 [shape = 'u8[65536]{0}', space=vmem, size = 0x10000, scoped, tag = 'input window, operand 4, single buffered']
    #allocation6 [shape = 's32[1]{0}', space=sflag, size = 0x4, scoped, tag = 'scoped memory for tpu_custom_call.1']
    #allocation7 [shape = 'u8[131072]{0}', space=vmem, size = 0x20000, scoped, tag = 'output window, operand 0']
    %11 = vsyncpa [#allocation3], 0
    %12 = vsyncpa [#allocation6], 0
    %13 = vsyncpa [#allocation4], 0
    %s14 = scalar_lea.sflag [#allocation4], 1
    %15 = vsyncpa %s14, 0
    loop: start=0, step=1, limit=4
    $region2: #{tpu_custom_call.1} parent=1 // loop_pre_header
      _
    $region3: #{tpu_custom_call.1} parent=1 // loop_header
      %s17 = sphi 0, %s21
      %p18 = scmp.ge.s32.totalorder %s17, 4
      %s27 = sphi 0, %s29
      %s30 = sphi 0, %s27
      %s31 = sphi 0, %s30
      %s47 = sphi 0, %s31
      %s51 = sphi 0, %s51
      %s53 = sphi 0, %s51
      %s54 = sphi 0, %s53
      %s68 = sphi 0, %s54
      %s72 = sphi 0, %s72
      %s74 = sphi 0, %s72
      %s75 = sphi 0, %s74
      %s89 = sphi 0, %s75
      %s93 = sphi 0, %s93
      %s95 = sphi 0, %s93
      %s96 = sphi 0, %s95
      %s110 = sphi 0, %s96
      %s114 = sphi 0, %s114
      %s116 = sphi 0, %s114
      %s117 = sphi 0, %s116
      %s131 = sphi 0, %s117
      %s135 = sphi 0, %s135
      %s137 = sphi 0, %s135
      %s138 = sphi 0, %s137
      %s152 = sphi 0, %s138
      %s158 = sphi 0, %s160
      %s161 = sphi 0, %s158
      %s162 = sphi 0, %s161
      %s178 = sphi 0, %s162
    $region4: #{tpu_custom_call.1} parent=1 // loop_header_branch
      %20 = sbr.rel (%p18) target = $region8
    $region5: #{tpu_custom_call.1} parent=1 // loop_body
      %s22 = ssub.s32 %s17, 1
      %s23 = ssub.s32 %s17, 2
      %s24 = sadd.s32 %s17, 1
      %s25 = ssub.s32 %s17, %s24
      %p26 = scmp.eq.s32.totalorder %s25, 0
      %s28 = sadd.s32 %s27, 1
      %s29 = scalar_select %p26, %s27, %s28
      %p32 = pneg %p26
      %p33 = scmp.eq.s32.totalorder %s17, 1
      %p34 = por %p32, %p33
      %p35 = scmp.ne.s32.totalorder %s27, %s30
      %p36 = scmp.eq.s32.totalorder %s17, 0
      %p37 = por %p35, %p36
      %p38 = scmp.ne.s32.totalorder %s27, %s30
      %p39 = scmp.eq.s32.totalorder %s22, 1
      %p40 = por %p38, %p39
      %p41 = scmp.ne.s32.totalorder %s30, %s31
      %p42 = scmp.eq.s32.totalorder %s22, 0
      %p43 = por %p41, %p42
      %p44 = scmp.ne.s32.totalorder %s30, %s31
      %p45 = scmp.eq.s32.totalorder %s23, 1
      %p46 = por %p44, %p45
      %p48 = scmp.ne.s32.totalorder %s31, %s47
      %p49 = scmp.eq.s32.totalorder %s23, 0
      %p50 = por %p48, %p49
      %s52 = sadd.s32 %s51, 1
      %p55 = scmp.eq.s32.totalorder %s17, 1
      %p56 = scmp.ne.s32.totalorder %s51, %s53
      %p57 = scmp.eq.s32.totalorder %s17, 0
      %p58 = por %p56, %p57
      %p59 = scmp.ne.s32.totalorder %s51, %s53
      %p60 = scmp.eq.s32.totalorder %s22, 1
      %p61 = por %p59, %p60
      %p62 = scmp.ne.s32.totalorder %s53, %s54
      %p63 = scmp.eq.s32.totalorder %s22, 0
      %p64 = por %p62, %p63
      %p65 = scmp.ne.s32.totalorder %s53, %s54
      %p66 = scmp.eq.s32.totalorder %s23, 1
      %p67 = por %p65, %p66
      %p69 = scmp.ne.s32.totalorder %s54, %s68
      %p70 = scmp.eq.s32.totalorder %s23, 0
      %p71 = por %p69, %p70
      %s73 = sadd.s32 %s72, 1
      %p76 = scmp.eq.s32.totalorder %s17, 1
      %p77 = scmp.ne.s32.totalorder %s72, %s74
      %p78 = scmp.eq.s32.totalorder %s17, 0
      %p79 = por %p77, %p78
      %p80 = scmp.ne.s32.totalorder %s72, %s74
      %p81 = scmp.eq.s32.totalorder %s22, 1
      %p82 = por %p80, %p81
      %p83 = scmp.ne.s32.totalorder %s74, %s75
      %p84 = scmp.eq.s32.totalorder %s22, 0
      %p85 = por %p83, %p84
      %p86 = scmp.ne.s32.totalorder %s74, %s75
      %p87 = scmp.eq.s32.totalorder %s23, 1
      %p88 = por %p86, %p87
      %p90 = scmp.ne.s32.totalorder %s75, %s89
      %p91 = scmp.eq.s32.totalorder %s23, 0
      %p92 = por %p90, %p91
      %s94 = sadd.s32 %s93, 1
      %p97 = scmp.eq.s32.totalorder %s17, 1
      %p98 = scmp.ne.s32.totalorder %s93, %s95
      %p99 = scmp.eq.s32.totalorder %s17, 0
      %p100 = por %p98, %p99
      %p101 = scmp.ne.s32.totalorder %s93, %s95
      %p102 = scmp.eq.s32.totalorder %s22, 1
      %p103 = por %p101, %p102
      %p104 = scmp.ne.s32.totalorder %s95, %s96
      %p105 = scmp.eq.s32.totalorder %s22, 0
      %p106 = por %p104, %p105
      %p107 = scmp.ne.s32.totalorder %s95, %s96
      %p108 = scmp.eq.s32.totalorder %s23, 1
      %p109 = por %p107, %p108
      %p111 = scmp.ne.s32.totalorder %s96, %s110
      %p112 = scmp.eq.s32.totalorder %s23, 0
      %p113 = por %p111, %p112
      %s115 = sadd.s32 %s114, 1
      %p118 = scmp.eq.s32.totalorder %s17, 1
      %p119 = scmp.ne.s32.totalorder %s114, %s116
      %p120 = scmp.eq.s32.totalorder %s17, 0
      %p121 = por %p119, %p120
      %p122 = scmp.ne.s32.totalorder %s114, %s116
      %p123 = scmp.eq.s32.totalorder %s22, 1
      %p124 = por %p122, %p123
      %p125 = scmp.ne.s32.totalorder %s116, %s117
      %p126 = scmp.eq.s32.totalorder %s22, 0
      %p127 = por %p125, %p126
      %p128 = scmp.ne.s32.totalorder %s116, %s117
      %p129 = scmp.eq.s32.totalorder %s23, 1
      %p130 = por %p128, %p129
      %p132 = scmp.ne.s32.totalorder %s117, %s131
      %p133 = scmp.eq.s32.totalorder %s23, 0
      %p134 = por %p132, %p133
      %s136 = sadd.s32 %s135, 1
      %p139 = scmp.eq.s32.totalorder %s17, 1
      %p140 = scmp.ne.s32.totalorder %s135, %s137
      %p141 = scmp.eq.s32.totalorder %s17, 0
      %p142 = por %p140, %p141
      %p143 = scmp.ne.s32.totalorder %s135, %s137
      %p144 = scmp.eq.s32.totalorder %s22, 1
      %p145 = por %p143, %p144
      %p146 = scmp.ne.s32.totalorder %s137, %s138
      %p147 = scmp.eq.s32.totalorder %s22, 0
      %p148 = por %p146, %p147
      %p149 = scmp.ne.s32.totalorder %s137, %s138
      %p150 = scmp.eq.s32.totalorder %s23, 1
      %p151 = por %p149, %p150
      %p153 = scmp.ne.s32.totalorder %s138, %s152
      %p154 = scmp.eq.s32.totalorder %s23, 0
      %p155 = por %p153, %p154
      %s156 = ssub.s32 %s17, %s24
      %p157 = scmp.eq.s32.totalorder %s156, 0
      %s159 = sadd.s32 %s158, 1
      %s160 = scalar_select %p157, %s158, %s159
      %p163 = pneg %p157
      %p164 = scmp.eq.s32.totalorder %s17, 1
      %p165 = por %p163, %p164
      %p166 = scmp.ne.s32.totalorder %s158, %s161
      %p167 = scmp.eq.s32.totalorder %s17, 0
      %p168 = por %p166, %p167
      %p169 = scmp.ne.s32.totalorder %s158, %s161
      %p170 = scmp.eq.s32.totalorder %s22, 1
      %p171 = por %p169, %p170
      %p172 = scmp.ne.s32.totalorder %s161, %s162
      %p173 = scmp.eq.s32.totalorder %s22, 0
      %p174 = por %p172, %p173
      %p175 = scmp.ne.s32.totalorder %s161, %s162
      %p176 = scmp.eq.s32.totalorder %s23, 1
      %p177 = por %p175, %p176
      %p179 = scmp.ne.s32.totalorder %s162, %s178
      %p180 = scmp.eq.s32.totalorder %s23, 0
      %p181 = por %p179, %p180
      %p182 = scmp.le.s32.totalorder 1, %s17
      %p183 = scmp.lt.s32.totalorder %s17, 3
      %p184 = pnand %p182, %p183
      %p185 = pneg %p184
      // Predicated region
      $region9: #{tpu_custom_call.1} parent=5 // pred_check
        _
      $region10: #{tpu_custom_call.1} parent=5 // pred_check_branch
        %187 = sbr.rel (%p184) target = $region12
      $region11: #{tpu_custom_call.1} parent=5 // pred_region
        %s188 = ssub.s32 %s17, 1
        // Predicated region
        $region13: #{tpu_custom_call.1} parent=11 // pred_check
          %p189 = pneg %p64
        $region14: #{tpu_custom_call.1} parent=11 // pred_check_branch
          %191 = sbr.rel (%p189) target = $region16
        $region15: #{tpu_custom_call.1} parent=11 // pred_region
          _
        $region16: #{tpu_custom_call.1} parent=11 // pred_fallthru
          _
        // Predicated region
        $region17: #{tpu_custom_call.1} parent=11 // pred_check
          %p192 = pneg %p85
        $region18: #{tpu_custom_call.1} parent=11 // pred_check_branch
          %194 = sbr.rel (%p192) target = $region20
        $region19: #{tpu_custom_call.1} parent=11 // pred_region
          %s196 = ssub.s32 2048, 2048
          %197 = vsyncadd [#allocation3], %s196
          %s198 = sshll.u32 [#allocation2], 4
          %s199 = int_to_ptr.vmem [resolvable:$true] %s198
          %204 = dma.hbm_to_vmem [thread:$0]  %s2, 2048, %s199, [#allocation3], 128, 128, 8
        $region20: #{tpu_custom_call.1} parent=11 // pred_fallthru
          _
        // Predicated region
        $region21: #{tpu_custom_call.1} parent=11 // pred_check
          %p205 = pneg %p106
        $region22: #{tpu_custom_call.1} parent=11 // pred_check_branch
          %207 = sbr.rel (%p205) target = $region24
        $region23: #{tpu_custom_call.1} parent=11 // pred_region
          _
        $region24: #{tpu_custom_call.1} parent=11 // pred_fallthru
          _
        // Predicated region
        $region25: #{tpu_custom_call.1} parent=11 // pred_check
          %p208 = pneg %p127
        $region26: #{tpu_custom_call.1} parent=11 // pred_check_branch
          %210 = sbr.rel (%p208) target = $region28
        $region27: #{tpu_custom_call.1} parent=11 // pred_region
          %s212 = ssub.s32 2048, 2048
          %213 = vsyncadd [#allocation6], %s212
          %s214 = sshll.u32 [#allocation5], 4
          %s215 = int_to_ptr.vmem [resolvable:$true] %s214
          %220 = dma.hbm_to_vmem [thread:$0]  %s4, 2048, %s215, [#allocation6], 128, 128, 8
        $region28: #{tpu_custom_call.1} parent=11 // pred_fallthru
          _
        // Predicated region
        $region29: #{tpu_custom_call.1} parent=11 // pred_check
          %p221 = pneg %p148
        $region30: #{tpu_custom_call.1} parent=11 // pred_check_branch
          %223 = sbr.rel (%p221) target = $region32
        $region31: #{tpu_custom_call.1} parent=11 // pred_region
          _
        $region32: #{tpu_custom_call.1} parent=11 // pred_fallthru
          _
      $region12: #{tpu_custom_call.1} parent=5 // pred_fallthru
        _
      %p224 = scmp.lt.s32.totalorder %s17, 2
      // Predicated region
      $region33: #{tpu_custom_call.1} parent=5 // pred_check
        %p225 = pneg %p224
      $region34: #{tpu_custom_call.1} parent=5 // pred_check_branch
        %227 = sbr.rel (%p225) target = $region36
      $region35: #{tpu_custom_call.1} parent=5 // pred_region
        // Predicated region
        $region37: #{tpu_custom_call.1} parent=35 // pred_check
          %p228 = pneg %p37
        $region38: #{tpu_custom_call.1} parent=35 // pred_check_branch
          %230 = sbr.rel (%p228) target = $region40
        $region39: #{tpu_custom_call.1} parent=35 // pred_region
          %s231 = smul.u32 16, %s17
          %p232 = scmp.lt.s32.totalorder %s231, 31
          %s233 = scalar_select %p232, %s231, 31
          %s234 = smul.addr %s233, 8
          %s235 = scalar_lea.vmem %s0, %s234
          %s236 = smul.u32 16, %s17
        $region40: #{tpu_custom_call.1} parent=35 // pred_fallthru
          _
      $region36: #{tpu_custom_call.1} parent=5 // pred_fallthru
        _
      %p237 = scmp.le.s32.totalorder 1, %s17
      %p238 = scmp.lt.s32.totalorder %s17, 3
      %p239 = pnand %p237, %p238
      %p240 = pneg %p239
      // Predicated region
      $region41: #{tpu_custom_call.1} parent=5 // pred_check
        _
      $region42: #{tpu_custom_call.1} parent=5 // pred_check_branch
        %242 = sbr.rel (%p239) target = $region44
      $region43: #{tpu_custom_call.1} parent=5 // pred_region
        %s243 = ssub.s32 %s17, 1
        // Predicated region
        $region45: #{tpu_custom_call.1} parent=43 // pred_check
          %p244 = pneg %p85
        $region46: #{tpu_custom_call.1} parent=43 // pred_check_branch
          %246 = sbr.rel (%p244) target = $region48
        $region47: #{tpu_custom_call.1} parent=43 // pred_region
          %247 = dma.done [#allocation3], 2048
        $region48: #{tpu_custom_call.1} parent=43 // pred_fallthru
          _
        // Predicated region
        $region49: #{tpu_custom_call.1} parent=43 // pred_check
          %p248 = pneg %p127
        $region50: #{tpu_custom_call.1} parent=43 // pred_check_branch
          %250 = sbr.rel (%p248) target = $region52
        $region51: #{tpu_custom_call.1} parent=43 // pred_region
          %251 = dma.done [#allocation6], 2048
        $region52: #{tpu_custom_call.1} parent=43 // pred_fallthru
          _
        %s252 = smul.u32 16, %s22
        %p253 = scmp.lt.s32.totalorder %s252, 31
        %s254 = scalar_select %p253, %s252, 31
        %s255 = smul.addr %s254, 8
        %s256 = scalar_lea.vmem %s0, %s255
        %p257 = pneg %p43
        %p258 = pneg %p40
        %p259 = pneg %p64
        %p260 = pneg %p61
        %p261 = pneg %p85
        %p262 = pneg %p82
        %p263 = pneg %p106
        %p264 = pneg %p103
        %p265 = pneg %p127
        %p266 = pneg %p124
        %p267 = pneg %p148
        %p268 = pneg %p145
        %p269 = pneg %p174
        %p270 = pneg %p171
        %s271 = sand.u32 %s161, 1
        %s272 = scalar_lea.sflag [#allocation4], %s271
        %s273 = sand.u32 %s161, 1
        %s274 = smul.addr %s273, 128
        %s275 = scalar_lea.vmem [#allocation7], %s274
        %s276 = smul.u32 16, %s22
        %p277 = scmp.lt.s32.totalorder %s276, 31
        %s278 = scalar_select %p277, %s276, 31
        %s279 = smul.addr %s278, 8
        %s280 = scalar_lea.vmem %s0, %s279
        %s281 = smul.u32 16, %s22
        %s282 = smul.u32 16, %s22
        %v283 = vld [vmem:[%s280] sm:$0xff]
        %v284 = vld [vmem:[%s280 + $0x8] sm:$0xff]
        %v285 = vld [vmem:[%s280 + $0x10] sm:$0xff]
        %v286 = vld [vmem:[%s280 + $0x18] sm:$0xff]
        %v287 = vld [vmem:[%s280 + $0x20] sm:$0xff]
        %v288 = vld [vmem:[%s280 + $0x28] sm:$0xff]
        %v289 = vld [vmem:[%s280 + $0x30] sm:$0xff]
        %v290 = vld [vmem:[%s280 + $0x38] sm:$0xff]
        %v291 = vld [vmem:[%s280 + $0x40] sm:$0xff]
        %v292 = vld [vmem:[%s280 + $0x48] sm:$0xff]
        %v293 = vld [vmem:[%s280 + $0x50] sm:$0xff]
        %v294 = vld [vmem:[%s280 + $0x58] sm:$0xff]
        %v295 = vld [vmem:[%s280 + $0x60] sm:$0xff]
        %v296 = vld [vmem:[%s280 + $0x68] sm:$0xff]
        %v297 = vld [vmem:[%s280 + $0x70] sm:$0xff]
        %v298 = vld [vmem:[%s280 + $0x78] sm:$0xff]
        %v299 = vlaneseq
        %v300 = vand.u32 %v299, 127
        %v301 = vadd.s32 %v300, 128
        %302 = vset.pattern.permute.xlu0 0
        %303 = vperm.xlu0 %302, %v283
        %v304 = vpop.permute.xlu0 %303
        %305 = vset.pattern.permute.xlu0 0
        %306 = vperm.xlu0 %305, %v284
        %v307 = vpop.permute.xlu0 %306
        %308 = vset.pattern.permute.xlu0 0
        %309 = vperm.xlu0 %308, %v285
        %v310 = vpop.permute.xlu0 %309
        %311 = vset.pattern.permute.xlu0 0
        %312 = vperm.xlu0 %311, %v286
        %v313 = vpop.permute.xlu0 %312
        %314 = vset.pattern.permute.xlu0 0
        %315 = vperm.xlu0 %314, %v287
        %v316 = vpop.permute.xlu0 %315
        %317 = vset.pattern.permute.xlu0 0
        %318 = vperm.xlu0 %317, %v288
        %v319 = vpop.permute.xlu0 %318
        %320 = vset.pattern.permute.xlu0 0
        %321 = vperm.xlu0 %320, %v289
        %v322 = vpop.permute.xlu0 %321
        %323 = vset.pattern.permute.xlu0 0
        %324 = vperm.xlu0 %323, %v290
        %v325 = vpop.permute.xlu0 %324
        %326 = vset.pattern.permute.xlu0 0
        %327 = vperm.xlu0 %326, %v291
        %v328 = vpop.permute.xlu0 %327
        %329 = vset.pattern.permute.xlu0 0
        %330 = vperm.xlu0 %329, %v292
        %v331 = vpop.permute.xlu0 %330
        %332 = vset.pattern.permute.xlu0 0
        %333 = vperm.xlu0 %332, %v293
        %v334 = vpop.permute.xlu0 %333
        %335 = vset.pattern.permute.xlu0 0
        %336 = vperm.xlu0 %335, %v294
        %v337 = vpop.permute.xlu0 %336
        %338 = vset.pattern.permute.xlu0 0
        %339 = vperm.xlu0 %338, %v295
        %v340 = vpop.permute.xlu0 %339
        %341 = vset.pattern.permute.xlu0 0
        %342 = vperm.xlu0 %341, %v296
        %v343 = vpop.permute.xlu0 %342
        %344 = vset.pattern.permute.xlu0 0
        %345 = vperm.xlu0 %344, %v297
        %v346 = vpop.permute.xlu0 %345
        %347 = vset.pattern.permute.xlu0 0
        %348 = vperm.xlu0 %347, %v298
        %v349 = vpop.permute.xlu0 %348
        %vm350 = vcmp.eq.s32.totalorder %v300, %v304
        %vm351 = vcmp.eq.s32.totalorder %v301, %v304
        %vm352 = vcmp.eq.s32.totalorder %v300, %v307
        %vm353 = vcmp.eq.s32.totalorder %v301, %v307
        %vm354 = vcmp.eq.s32.totalorder %v300, %v310
        %vm355 = vcmp.eq.s32.totalorder %v301, %v310
        %vm356 = vcmp.eq.s32.totalorder %v300, %v313
        %vm357 = vcmp.eq.s32.totalorder %v301, %v313
        %vm358 = vcmp.eq.s32.totalorder %v300, %v316
        %vm359 = vcmp.eq.s32.totalorder %v301, %v316
        %vm360 = vcmp.eq.s32.totalorder %v300, %v319
        %vm361 = vcmp.eq.s32.totalorder %v301, %v319
        %vm362 = vcmp.eq.s32.totalorder %v300, %v322
        %vm363 = vcmp.eq.s32.totalorder %v301, %v322
        %vm364 = vcmp.eq.s32.totalorder %v300, %v325
        %vm365 = vcmp.eq.s32.totalorder %v301, %v325
        %vm366 = vcmp.eq.s32.totalorder %v300, %v328
        %vm367 = vcmp.eq.s32.totalorder %v301, %v328
        %vm368 = vcmp.eq.s32.totalorder %v300, %v331
        %vm369 = vcmp.eq.s32.totalorder %v301, %v331
        %vm370 = vcmp.eq.s32.totalorder %v300, %v334
        %vm371 = vcmp.eq.s32.totalorder %v301, %v334
        %vm372 = vcmp.eq.s32.totalorder %v300, %v337
        %vm373 = vcmp.eq.s32.totalorder %v301, %v337
        %vm374 = vcmp.eq.s32.totalorder %v300, %v340
        %vm375 = vcmp.eq.s32.totalorder %v301, %v340
        %vm376 = vcmp.eq.s32.totalorder %v300, %v343
        %vm377 = vcmp.eq.s32.totalorder %v301, %v343
        %vm378 = vcmp.eq.s32.totalorder %v300, %v346
        %vm379 = vcmp.eq.s32.totalorder %v301, %v346
        %vm380 = vcmp.eq.s32.totalorder %v300, %v349
        %vm381 = vcmp.eq.s32.totalorder %v301, %v349
        %v382 = vsel %vm350, 1, 0
        %v383 = vsel %vm351, 1, 0
        %v384 = vsel %vm352, 1, 0
        %v385 = vsel %vm353, 1, 0
        %v386 = vsel %vm354, 1, 0
        %v387 = vsel %vm355, 1, 0
        %v388 = vsel %vm356, 1, 0
        %v389 = vsel %vm357, 1, 0
        %v390 = vsel %vm358, 1, 0
        %v391 = vsel %vm359, 1, 0
        %v392 = vsel %vm360, 1, 0
        %v393 = vsel %vm361, 1, 0
        %v394 = vsel %vm362, 1, 0
        %v395 = vsel %vm363, 1, 0
        %v396 = vsel %vm364, 1, 0
        %v397 = vsel %vm365, 1, 0
        %v398 = vsel %vm366, 1, 0
        %v399 = vsel %vm367, 1, 0
        %v400 = vsel %vm368, 1, 0
        %v401 = vsel %vm369, 1, 0
        %v402 = vsel %vm370, 1, 0
        %v403 = vsel %vm371, 1, 0
        %v404 = vsel %vm372, 1, 0
        %v405 = vsel %vm373, 1, 0
        %v406 = vsel %vm374, 1, 0
        %v407 = vsel %vm375, 1, 0
        %v408 = vsel %vm376, 1, 0
        %v409 = vsel %vm377, 1, 0
        %v410 = vsel %vm378, 1, 0
        %v411 = vsel %vm379, 1, 0
        %v412 = vsel %vm380, 1, 0
        %v413 = vsel %vm381, 1, 0
        %v414 = vcvt.s32.f32 %v382
        %v415 = vcvt.s32.f32 %v383
        %v416 = vcvt.s32.f32 %v384
        %v417 = vcvt.s32.f32 %v385
        %v418 = vcvt.s32.f32 %v386
        %v419 = vcvt.s32.f32 %v387
        %v420 = vcvt.s32.f32 %v388
        %v421 = vcvt.s32.f32 %v389
        %v422 = vcvt.s32.f32 %v390
        %v423 = vcvt.s32.f32 %v391
        %v424 = vcvt.s32.f32 %v392
        %v425 = vcvt.s32.f32 %v393
        %v426 = vcvt.s32.f32 %v394
        %v427 = vcvt.s32.f32 %v395
        %v428 = vcvt.s32.f32 %v396
        %v429 = vcvt.s32.f32 %v397
        %v430 = vcvt.s32.f32 %v398
        %v431 = vcvt.s32.f32 %v399
        %v432 = vcvt.s32.f32 %v400
        %v433 = vcvt.s32.f32 %v401
        %v434 = vcvt.s32.f32 %v402
        %v435 = vcvt.s32.f32 %v403
        %v436 = vcvt.s32.f32 %v404
        %v437 = vcvt.s32.f32 %v405
        %v438 = vcvt.s32.f32 %v406
        %v439 = vcvt.s32.f32 %v407
        %v440 = vcvt.s32.f32 %v408
        %v441 = vcvt.s32.f32 %v409
        %v442 = vcvt.s32.f32 %v410
        %v443 = vcvt.s32.f32 %v411
        %v444 = vcvt.s32.f32 %v412
        %v445 = vcvt.s32.f32 %v413
        %v446 = vadd.f32 %v414, 0.0
        %v447 = vadd.f32 %v415, 0.0
        %v448 = vadd.f32 %v416, 0.0
        %v449 = vadd.f32 %v417, 0.0
        %v450 = vadd.f32 %v418, 0.0
        %v451 = vadd.f32 %v419, 0.0
        %v452 = vadd.f32 %v420, 0.0
        %v453 = vadd.f32 %v421, 0.0
        %v454 = vadd.f32 %v422, 0.0
        %v455 = vadd.f32 %v423, 0.0
        %v456 = vadd.f32 %v424, 0.0
        %v457 = vadd.f32 %v425, 0.0
        %v458 = vadd.f32 %v426, 0.0
        %v459 = vadd.f32 %v427, 0.0
        %v460 = vadd.f32 %v428, 0.0
        %v461 = vadd.f32 %v429, 0.0
        %v462 = vadd.f32 %v430, 0.0
        %v463 = vadd.f32 %v431, 0.0
        %v464 = vadd.f32 %v432, 0.0
        %v465 = vadd.f32 %v433, 0.0
        %v466 = vadd.f32 %v434, 0.0
        %v467 = vadd.f32 %v435, 0.0
        %v468 = vadd.f32 %v436, 0.0
        %v469 = vadd.f32 %v437, 0.0
        %v470 = vadd.f32 %v438, 0.0
        %v471 = vadd.f32 %v439, 0.0
        %v472 = vadd.f32 %v440, 0.0
        %v473 = vadd.f32 %v441, 0.0
        %v474 = vadd.f32 %v442, 0.0
        %v475 = vadd.f32 %v443, 0.0
        %v476 = vadd.f32 %v444, 0.0
        %v477 = vadd.f32 %v445, 0.0
        %v478 = vadd.s32 %v283, 32
        %v479 = vadd.s32 %v284, 32
        %v480 = vadd.s32 %v285, 32
        %v481 = vadd.s32 %v286, 32
        %v482 = vadd.s32 %v287, 32
        %v483 = vadd.s32 %v288, 32
        %v484 = vadd.s32 %v289, 32
        %v485 = vadd.s32 %v290, 32
        %v486 = vadd.s32 %v291, 32
        %v487 = vadd.s32 %v292, 32
        %v488 = vadd.s32 %v293, 32
        %v489 = vadd.s32 %v294, 32
        %v490 = vadd.s32 %v295, 32
        %v491 = vadd.s32 %v296, 32
        %v492 = vadd.s32 %v297, 32
        %v493 = vadd.s32 %v298, 32
        %494 = vset.pattern.permute.xlu0 1
        %495 = vperm.xlu0 %494, %v478
        %v496 = vpop.permute.xlu0 %495
        %497 = vset.pattern.permute.xlu0 1
        %498 = vperm.xlu0 %497, %v479
        %v499 = vpop.permute.xlu0 %498
        %500 = vset.pattern.permute.xlu0 1
        %501 = vperm.xlu0 %500, %v480
        %v502 = vpop.permute.xlu0 %501
        %503 = vset.pattern.permute.xlu0 1
        %504 = vperm.xlu0 %503, %v481
        %v505 = vpop.permute.xlu0 %504
        %506 = vset.pattern.permute.xlu0 1
        %507 = vperm.xlu0 %506, %v482
        %v508 = vpop.permute.xlu0 %507
        %509 = vset.pattern.permute.xlu0 1
        %510 = vperm.xlu0 %509, %v483
        %v511 = vpop.permute.xlu0 %510
        %512 = vset.pattern.permute.xlu0 1
        %513 = vperm.xlu0 %512, %v484
        %v514 = vpop.permute.xlu0 %513
        %515 = vset.pattern.permute.xlu0 1
        %516 = vperm.xlu0 %515, %v485
        %v517 = vpop.permute.xlu0 %516
        %518 = vset.pattern.permute.xlu0 1
        %519 = vperm.xlu0 %518, %v486
        %v520 = vpop.permute.xlu0 %519
        %521 = vset.pattern.permute.xlu0 1
        %522 = vperm.xlu0 %521, %v487
        %v523 = vpop.permute.xlu0 %522
        %524 = vset.pattern.permute.xlu0 1
        %525 = vperm.xlu0 %524, %v488
        %v526 = vpop.permute.xlu0 %525
        %527 = vset.pattern.permute.xlu0 1
        %528 = vperm.xlu0 %527, %v489
        %v529 = vpop.permute.xlu0 %528
        %530 = vset.pattern.permute.xlu0 1
        %531 = vperm.xlu0 %530, %v490
        %v532 = vpop.permute.xlu0 %531
        %533 = vset.pattern.permute.xlu0 1
        %534 = vperm.xlu0 %533, %v491
        %v535 = vpop.permute.xlu0 %534
        %536 = vset.pattern.permute.xlu0 1
        %537 = vperm.xlu0 %536, %v492
        %v538 = vpop.permute.xlu0 %537
        %539 = vset.pattern.permute.xlu0 1
        %540 = vperm.xlu0 %539, %v493
        %v541 = vpop.permute.xlu0 %540
        %vm542 = vcmp.eq.s32.totalorder %v300, %v496
        %vm543 = vcmp.eq.s32.totalorder %v301, %v496
        %vm544 = vcmp.eq.s32.totalorder %v300, %v499
        %vm545 = vcmp.eq.s32.totalorder %v301, %v499
        %vm546 = vcmp.eq.s32.totalorder %v300, %v502
        %vm547 = vcmp.eq.s32.totalorder %v301, %v502
        %vm548 = vcmp.eq.s32.totalorder %v300, %v505
        %vm549 = vcmp.eq.s32.totalorder %v301, %v505
        %vm550 = vcmp.eq.s32.totalorder %v300, %v508
        %vm551 = vcmp.eq.s32.totalorder %v301, %v508
        %vm552 = vcmp.eq.s32.totalorder %v300, %v511
        %vm553 = vcmp.eq.s32.totalorder %v301, %v511
        %vm554 = vcmp.eq.s32.totalorder %v300, %v514
        %vm555 = vcmp.eq.s32.totalorder %v301, %v514
        %vm556 = vcmp.eq.s32.totalorder %v300, %v517
        %vm557 = vcmp.eq.s32.totalorder %v301, %v517
        %vm558 = vcmp.eq.s32.totalorder %v300, %v520
        %vm559 = vcmp.eq.s32.totalorder %v301, %v520
        %vm560 = vcmp.eq.s32.totalorder %v300, %v523
        %vm561 = vcmp.eq.s32.totalorder %v301, %v523
        %vm562 = vcmp.eq.s32.totalorder %v300, %v526
        %vm563 = vcmp.eq.s32.totalorder %v301, %v526
        %vm564 = vcmp.eq.s32.totalorder %v300, %v529
        %vm565 = vcmp.eq.s32.totalorder %v301, %v529
        %vm566 = vcmp.eq.s32.totalorder %v300, %v532
        %vm567 = vcmp.eq.s32.totalorder %v301, %v532
        %vm568 = vcmp.eq.s32.totalorder %v300, %v535
        %vm569 = vcmp.eq.s32.totalorder %v301, %v535
        %vm570 = vcmp.eq.s32.totalorder %v300, %v538
        %vm571 = vcmp.eq.s32.totalorder %v301, %v538
        %vm572 = vcmp.eq.s32.totalorder %v300, %v541
        %vm573 = vcmp.eq.s32.totalorder %v301, %v541
        %v574 = vsel %vm542, 1, 0
        %v575 = vsel %vm543, 1, 0
        %v576 = vsel %vm544, 1, 0
        %v577 = vsel %vm545, 1, 0
        %v578 = vsel %vm546, 1, 0
        %v579 = vsel %vm547, 1, 0
        %v580 = vsel %vm548, 1, 0
        %v581 = vsel %vm549, 1, 0
        %v582 = vsel %vm550, 1, 0
        %v583 = vsel %vm551, 1, 0
        %v584 = vsel %vm552, 1, 0
        %v585 = vsel %vm553, 1, 0
        %v586 = vsel %vm554, 1, 0
        %v587 = vsel %vm555, 1, 0
        %v588 = vsel %vm556, 1, 0
        %v589 = vsel %vm557, 1, 0
        %v590 = vsel %vm558, 1, 0
        %v591 = vsel %vm559, 1, 0
        %v592 = vsel %vm560, 1, 0
        %v593 = vsel %vm561, 1, 0
        %v594 = vsel %vm562, 1, 0
        %v595 = vsel %vm563, 1, 0
        %v596 = vsel %vm564, 1, 0
        %v597 = vsel %vm565, 1, 0
        %v598 = vsel %vm566, 1, 0
        %v599 = vsel %vm567, 1, 0
        %v600 = vsel %vm568, 1, 0
        %v601 = vsel %vm569, 1, 0
        %v602 = vsel %vm570, 1, 0
        %v603 = vsel %vm571, 1, 0
        %v604 = vsel %vm572, 1, 0
        %v605 = vsel %vm573, 1, 0
        %v606 = vcvt.s32.f32 %v574
        %v607 = vcvt.s32.f32 %v575
        %v608 = vcvt.s32.f32 %v576
        %v609 = vcvt.s32.f32 %v577
        %v610 = vcvt.s32.f32 %v578
        %v611 = vcvt.s32.f32 %v579
        %v612 = vcvt.s32.f32 %v580
        %v613 = vcvt.s32.f32 %v581
        %v614 = vcvt.s32.f32 %v582
        %v615 = vcvt.s32.f32 %v583
        %v616 = vcvt.s32.f32 %v584
        %v617 = vcvt.s32.f32 %v585
        %v618 = vcvt.s32.f32 %v586
        %v619 = vcvt.s32.f32 %v587
        %v620 = vcvt.s32.f32 %v588
        %v621 = vcvt.s32.f32 %v589
        %v622 = vcvt.s32.f32 %v590
        %v623 = vcvt.s32.f32 %v591
        %v624 = vcvt.s32.f32 %v592
        %v625 = vcvt.s32.f32 %v593
        %v626 = vcvt.s32.f32 %v594
        %v627 = vcvt.s32.f32 %v595
        %v628 = vcvt.s32.f32 %v596
        %v629 = vcvt.s32.f32 %v597
        %v630 = vcvt.s32.f32 %v598
        %v631 = vcvt.s32.f32 %v599
        %v632 = vcvt.s32.f32 %v600
        %v633 = vcvt.s32.f32 %v601
        %v634 = vcvt.s32.f32 %v602
        %v635 = vcvt.s32.f32 %v603
        %v636 = vcvt.s32.f32 %v604
        %v637 = vcvt.s32.f32 %v605
        %v638 = vadd.f32 %v446, %v606
        %v639 = vadd.f32 %v447, %v607
        %v640 = vadd.f32 %v448, %v608
        %v641 = vadd.f32 %v449, %v609
        %v642 = vadd.f32 %v450, %v610
        %v643 = vadd.f32 %v451, %v611
        %v644 = vadd.f32 %v452, %v612
        %v645 = vadd.f32 %v453, %v613
        %v646 = vadd.f32 %v454, %v614
        %v647 = vadd.f32 %v455, %v615
        %v648 = vadd.f32 %v456, %v616
        %v649 = vadd.f32 %v457, %v617
        %v650 = vadd.f32 %v458, %v618
        %v651 = vadd.f32 %v459, %v619
        %v652 = vadd.f32 %v460, %v620
        %v653 = vadd.f32 %v461, %v621
        %v654 = vadd.f32 %v462, %v622
        %v655 = vadd.f32 %v463, %v623
        %v656 = vadd.f32 %v464, %v624
        %v657 = vadd.f32 %v465, %v625
        %v658 = vadd.f32 %v466, %v626
        %v659 = vadd.f32 %v467, %v627
        %v660 = vadd.f32 %v468, %v628
        %v661 = vadd.f32 %v469, %v629
        %v662 = vadd.f32 %v470, %v630
        %v663 = vadd.f32 %v471, %v631
        %v664 = vadd.f32 %v472, %v632
        %v665 = vadd.f32 %v473, %v633
        %v666 = vadd.f32 %v474, %v634
        %v667 = vadd.f32 %v475, %v635
        %v668 = vadd.f32 %v476, %v636
        %v669 = vadd.f32 %v477, %v637
        %v670 = vadd.s32 %v283, 64
        %v671 = vadd.s32 %v284, 64
        %v672 = vadd.s32 %v285, 64
        %v673 = vadd.s32 %v286, 64
        %v674 = vadd.s32 %v287, 64
        %v675 = vadd.s32 %v288, 64
        %v676 = vadd.s32 %v289, 64
        %v677 = vadd.s32 %v290, 64
        %v678 = vadd.s32 %v291, 64
        %v679 = vadd.s32 %v292, 64
        %v680 = vadd.s32 %v293, 64
        %v681 = vadd.s32 %v294, 64
        %v682 = vadd.s32 %v295, 64
        %v683 = vadd.s32 %v296, 64
        %v684 = vadd.s32 %v297, 64
        %v685 = vadd.s32 %v298, 64
        %686 = vset.pattern.permute.xlu0 2
        %687 = vperm.xlu0 %686, %v670
        %v688 = vpop.permute.xlu0 %687
        %689 = vset.pattern.permute.xlu0 2
        %690 = vperm.xlu0 %689, %v671
        %v691 = vpop.permute.xlu0 %690
        %692 = vset.pattern.permute.xlu0 2
        %693 = vperm.xlu0 %692, %v672
        %v694 = vpop.permute.xlu0 %693
        %695 = vset.pattern.permute.xlu0 2
        %696 = vperm.xlu0 %695, %v673
        %v697 = vpop.permute.xlu0 %696
        %698 = vset.pattern.permute.xlu0 2
        %699 = vperm.xlu0 %698, %v674
        %v700 = vpop.permute.xlu0 %699
        %701 = vset.pattern.permute.xlu0 2
        %702 = vperm.xlu0 %701, %v675
        %v703 = vpop.permute.xlu0 %702
        %704 = vset.pattern.permute.xlu0 2
        %705 = vperm.xlu0 %704, %v676
        %v706 = vpop.permute.xlu0 %705
        %707 = vset.pattern.permute.xlu0 2
        %708 = vperm.xlu0 %707, %v677
        %v709 = vpop.permute.xlu0 %708
        %710 = vset.pattern.permute.xlu0 2
        %711 = vperm.xlu0 %710, %v678
        %v712 = vpop.permute.xlu0 %711
        %713 = vset.pattern.permute.xlu0 2
        %714 = vperm.xlu0 %713, %v679
        %v715 = vpop.permute.xlu0 %714
        %716 = vset.pattern.permute.xlu0 2
        %717 = vperm.xlu0 %716, %v680
        %v718 = vpop.permute.xlu0 %717
        %719 = vset.pattern.permute.xlu0 2
        %720 = vperm.xlu0 %719, %v681
        %v721 = vpop.permute.xlu0 %720
        %722 = vset.pattern.permute.xlu0 2
        %723 = vperm.xlu0 %722, %v682
        %v724 = vpop.permute.xlu0 %723
        %725 = vset.pattern.permute.xlu0 2
        %726 = vperm.xlu0 %725, %v683
        %v727 = vpop.permute.xlu0 %726
        %728 = vset.pattern.permute.xlu0 2
        %729 = vperm.xlu0 %728, %v684
        %v730 = vpop.permute.xlu0 %729
        %731 = vset.pattern.permute.xlu0 2
        %732 = vperm.xlu0 %731, %v685
        %v733 = vpop.permute.xlu0 %732
        %vm734 = vcmp.eq.s32.totalorder %v300, %v688
        %vm735 = vcmp.eq.s32.totalorder %v301, %v688
        %vm736 = vcmp.eq.s32.totalorder %v300, %v691
        %vm737 = vcmp.eq.s32.totalorder %v301, %v691
        %vm738 = vcmp.eq.s32.totalorder %v300, %v694
        %vm739 = vcmp.eq.s32.totalorder %v301, %v694
        %vm740 = vcmp.eq.s32.totalorder %v300, %v697
        %vm741 = vcmp.eq.s32.totalorder %v301, %v697
        %vm742 = vcmp.eq.s32.totalorder %v300, %v700
        %vm743 = vcmp.eq.s32.totalorder %v301, %v700
        %vm744 = vcmp.eq.s32.totalorder %v300, %v703
        %vm745 = vcmp.eq.s32.totalorder %v301, %v703
        %vm746 = vcmp.eq.s32.totalorder %v300, %v706
        %vm747 = vcmp.eq.s32.totalorder %v301, %v706
        %vm748 = vcmp.eq.s32.totalorder %v300, %v709
        %vm749 = vcmp.eq.s32.totalorder %v301, %v709
        %vm750 = vcmp.eq.s32.totalorder %v300, %v712
        %vm751 = vcmp.eq.s32.totalorder %v301, %v712
        %vm752 = vcmp.eq.s32.totalorder %v300, %v715
        %vm753 = vcmp.eq.s32.totalorder %v301, %v715
        %vm754 = vcmp.eq.s32.totalorder %v300, %v718
        %vm755 = vcmp.eq.s32.totalorder %v301, %v718
        %vm756 = vcmp.eq.s32.totalorder %v300, %v721
        %vm757 = vcmp.eq.s32.totalorder %v301, %v721
        %vm758 = vcmp.eq.s32.totalorder %v300, %v724
        %vm759 = vcmp.eq.s32.totalorder %v301, %v724
        %vm760 = vcmp.eq.s32.totalorder %v300, %v727
        %vm761 = vcmp.eq.s32.totalorder %v301, %v727
        %vm762 = vcmp.eq.s32.totalorder %v300, %v730
        %vm763 = vcmp.eq.s32.totalorder %v301, %v730
        %vm764 = vcmp.eq.s32.totalorder %v300, %v733
        %vm765 = vcmp.eq.s32.totalorder %v301, %v733
        %v766 = vsel %vm734, 1, 0
        %v767 = vsel %vm735, 1, 0
        %v768 = vsel %vm736, 1, 0
        %v769 = vsel %vm737, 1, 0
        %v770 = vsel %vm738, 1, 0
        %v771 = vsel %vm739, 1, 0
        %v772 = vsel %vm740, 1, 0
        %v773 = vsel %vm741, 1, 0
        %v774 = vsel %vm742, 1, 0
        %v775 = vsel %vm743, 1, 0
        %v776 = vsel %vm744, 1, 0
        %v777 = vsel %vm745, 1, 0
        %v778 = vsel %vm746, 1, 0
        %v779 = vsel %vm747, 1, 0
        %v780 = vsel %vm748, 1, 0
        %v781 = vsel %vm749, 1, 0
        %v782 = vsel %vm750, 1, 0
        %v783 = vsel %vm751, 1, 0
        %v784 = vsel %vm752, 1, 0
        %v785 = vsel %vm753, 1, 0
        %v786 = vsel %vm754, 1, 0
        %v787 = vsel %vm755, 1, 0
        %v788 = vsel %vm756, 1, 0
        %v789 = vsel %vm757, 1, 0
        %v790 = vsel %vm758, 1, 0
        %v791 = vsel %vm759, 1, 0
        %v792 = vsel %vm760, 1, 0
        %v793 = vsel %vm761, 1, 0
        %v794 = vsel %vm762, 1, 0
        %v795 = vsel %vm763, 1, 0
        %v796 = vsel %vm764, 1, 0
        %v797 = vsel %vm765, 1, 0
        %v798 = vcvt.s32.f32 %v766
        %v799 = vcvt.s32.f32 %v767
        %v800 = vcvt.s32.f32 %v768
        %v801 = vcvt.s32.f32 %v769
        %v802 = vcvt.s32.f32 %v770
        %v803 = vcvt.s32.f32 %v771
        %v804 = vcvt.s32.f32 %v772
        %v805 = vcvt.s32.f32 %v773
        %v806 = vcvt.s32.f32 %v774
        %v807 = vcvt.s32.f32 %v775
        %v808 = vcvt.s32.f32 %v776
        %v809 = vcvt.s32.f32 %v777
        %v810 = vcvt.s32.f32 %v778
        %v811 = vcvt.s32.f32 %v779
        %v812 = vcvt.s32.f32 %v780
        %v813 = vcvt.s32.f32 %v781
        %v814 = vcvt.s32.f32 %v782
        %v815 = vcvt.s32.f32 %v783
        %v816 = vcvt.s32.f32 %v784
        %v817 = vcvt.s32.f32 %v785
        %v818 = vcvt.s32.f32 %v786
        %v819 = vcvt.s32.f32 %v787
        %v820 = vcvt.s32.f32 %v788
        %v821 = vcvt.s32.f32 %v789
        %v822 = vcvt.s32.f32 %v790
        %v823 = vcvt.s32.f32 %v791
        %v824 = vcvt.s32.f32 %v792
        %v825 = vcvt.s32.f32 %v793
        %v826 = vcvt.s32.f32 %v794
        %v827 = vcvt.s32.f32 %v795
        %v828 = vcvt.s32.f32 %v796
        %v829 = vcvt.s32.f32 %v797
        %v830 = vadd.f32 %v638, %v798
        %v831 = vadd.f32 %v639, %v799
        %v832 = vadd.f32 %v640, %v800
        %v833 = vadd.f32 %v641, %v801
        %v834 = vadd.f32 %v642, %v802
        %v835 = vadd.f32 %v643, %v803
        %v836 = vadd.f32 %v644, %v804
        %v837 = vadd.f32 %v645, %v805
        %v838 = vadd.f32 %v646, %v806
        %v839 = vadd.f32 %v647, %v807
        %v840 = vadd.f32 %v648, %v808
        %v841 = vadd.f32 %v649, %v809
        %v842 = vadd.f32 %v650, %v810
        %v843 = vadd.f32 %v651, %v811
        %v844 = vadd.f32 %v652, %v812
        %v845 = vadd.f32 %v653, %v813
        %v846 = vadd.f32 %v654, %v814
        %v847 = vadd.f32 %v655, %v815
        %v848 = vadd.f32 %v656, %v816
        %v849 = vadd.f32 %v657, %v817
        %v850 = vadd.f32 %v658, %v818
        %v851 = vadd.f32 %v659, %v819
        %v852 = vadd.f32 %v660, %v820
        %v853 = vadd.f32 %v661, %v821
        %v854 = vadd.f32 %v662, %v822
        %v855 = vadd.f32 %v663, %v823
        %v856 = vadd.f32 %v664, %v824
        %v857 = vadd.f32 %v665, %v825
        %v858 = vadd.f32 %v666, %v826
        %v859 = vadd.f32 %v667, %v827
        %v860 = vadd.f32 %v668, %v828
        %v861 = vadd.f32 %v669, %v829
        %v862 = vadd.s32 %v283, 96
        %v863 = vadd.s32 %v284, 96
        %v864 = vadd.s32 %v285, 96
        %v865 = vadd.s32 %v286, 96
        %v866 = vadd.s32 %v287, 96
        %v867 = vadd.s32 %v288, 96
        %v868 = vadd.s32 %v289, 96
        %v869 = vadd.s32 %v290, 96
        %v870 = vadd.s32 %v291, 96
        %v871 = vadd.s32 %v292, 96
        %v872 = vadd.s32 %v293, 96
        %v873 = vadd.s32 %v294, 96
        %v874 = vadd.s32 %v295, 96
        %v875 = vadd.s32 %v296, 96
        %v876 = vadd.s32 %v297, 96
        %v877 = vadd.s32 %v298, 96
        %878 = vset.pattern.permute.xlu0 3
        %879 = vperm.xlu0 %878, %v862
        %v880 = vpop.permute.xlu0 %879
        %881 = vset.pattern.permute.xlu0 3
        %882 = vperm.xlu0 %881, %v863
        %v883 = vpop.permute.xlu0 %882
        %884 = vset.pattern.permute.xlu0 3
        %885 = vperm.xlu0 %884, %v864
        %v886 = vpop.permute.xlu0 %885
        %887 = vset.pattern.permute.xlu0 3
        %888 = vperm.xlu0 %887, %v865
        %v889 = vpop.permute.xlu0 %888
        %890 = vset.pattern.permute.xlu0 3
        %891 = vperm.xlu0 %890, %v866
        %v892 = vpop.permute.xlu0 %891
        %893 = vset.pattern.permute.xlu0 3
        %894 = vperm.xlu0 %893, %v867
        %v895 = vpop.permute.xlu0 %894
        %896 = vset.pattern.permute.xlu0 3
        %897 = vperm.xlu0 %896, %v868
        %v898 = vpop.permute.xlu0 %897
        %899 = vset.pattern.permute.xlu0 3
        %900 = vperm.xlu0 %899, %v869
        %v901 = vpop.permute.xlu0 %900
        %902 = vset.pattern.permute.xlu0 3
        %903 = vperm.xlu0 %902, %v870
        %v904 = vpop.permute.xlu0 %903
        %905 = vset.pattern.permute.xlu0 3
        %906 = vperm.xlu0 %905, %v871
        %v907 = vpop.permute.xlu0 %906
        %908 = vset.pattern.permute.xlu0 3
        %909 = vperm.xlu0 %908, %v872
        %v910 = vpop.permute.xlu0 %909
        %911 = vset.pattern.permute.xlu0 3
        %912 = vperm.xlu0 %911, %v873
        %v913 = vpop.permute.xlu0 %912
        %914 = vset.pattern.permute.xlu0 3
        %915 = vperm.xlu0 %914, %v874
        %v916 = vpop.permute.xlu0 %915
        %917 = vset.pattern.permute.xlu0 3
        %918 = vperm.xlu0 %917, %v875
        %v919 = vpop.permute.xlu0 %918
        %920 = vset.pattern.permute.xlu0 3
        %921 = vperm.xlu0 %920, %v876
        %v922 = vpop.permute.xlu0 %921
        %923 = vset.pattern.permute.xlu0 3
        %924 = vperm.xlu0 %923, %v877
        %v925 = vpop.permute.xlu0 %924
        %vm926 = vcmp.eq.s32.totalorder %v300, %v880
        %vm927 = vcmp.eq.s32.totalorder %v301, %v880
        %vm928 = vcmp.eq.s32.totalorder %v300, %v883
        %vm929 = vcmp.eq.s32.totalorder %v301, %v883
        %vm930 = vcmp.eq.s32.totalorder %v300, %v886
        %vm931 = vcmp.eq.s32.totalorder %v301, %v886
        %vm932 = vcmp.eq.s32.totalorder %v300, %v889
        %vm933 = vcmp.eq.s32.totalorder %v301, %v889
        %vm934 = vcmp.eq.s32.totalorder %v300, %v892
        %vm935 = vcmp.eq.s32.totalorder %v301, %v892
        %vm936 = vcmp.eq.s32.totalorder %v300, %v895
        %vm937 = vcmp.eq.s32.totalorder %v301, %v895
        %vm938 = vcmp.eq.s32.totalorder %v300, %v898
        %vm939 = vcmp.eq.s32.totalorder %v301, %v898
        %vm940 = vcmp.eq.s32.totalorder %v300, %v901
        %vm941 = vcmp.eq.s32.totalorder %v301, %v901
        %vm942 = vcmp.eq.s32.totalorder %v300, %v904
        %vm943 = vcmp.eq.s32.totalorder %v301, %v904
        %vm944 = vcmp.eq.s32.totalorder %v300, %v907
        %vm945 = vcmp.eq.s32.totalorder %v301, %v907
        %vm946 = vcmp.eq.s32.totalorder %v300, %v910
        %vm947 = vcmp.eq.s32.totalorder %v301, %v910
        %vm948 = vcmp.eq.s32.totalorder %v300, %v913
        %vm949 = vcmp.eq.s32.totalorder %v301, %v913
        %vm950 = vcmp.eq.s32.totalorder %v300, %v916
        %vm951 = vcmp.eq.s32.totalorder %v301, %v916
        %vm952 = vcmp.eq.s32.totalorder %v300, %v919
        %vm953 = vcmp.eq.s32.totalorder %v301, %v919
        %vm954 = vcmp.eq.s32.totalorder %v300, %v922
        %vm955 = vcmp.eq.s32.totalorder %v301, %v922
        %vm956 = vcmp.eq.s32.totalorder %v300, %v925
        %vm957 = vcmp.eq.s32.totalorder %v301, %v925
        %v958 = vsel %vm926, 1, 0
        %v959 = vsel %vm927, 1, 0
        %v960 = vsel %vm928, 1, 0
        %v961 = vsel %vm929, 1, 0
        %v962 = vsel %vm930, 1, 0
        %v963 = vsel %vm931, 1, 0
        %v964 = vsel %vm932, 1, 0
        %v965 = vsel %vm933, 1, 0
        %v966 = vsel %vm934, 1, 0
        %v967 = vsel %vm935, 1, 0
        %v968 = vsel %vm936, 1, 0
        %v969 = vsel %vm937, 1, 0
        %v970 = vsel %vm938, 1, 0
        %v971 = vsel %vm939, 1, 0
        %v972 = vsel %vm940, 1, 0
        %v973 = vsel %vm941, 1, 0
        %v974 = vsel %vm942, 1, 0
        %v975 = vsel %vm943, 1, 0
        %v976 = vsel %vm944, 1, 0
        %v977 = vsel %vm945, 1, 0
        %v978 = vsel %vm946, 1, 0
        %v979 = vsel %vm947, 1, 0
        %v980 = vsel %vm948, 1, 0
        %v981 = vsel %vm949, 1, 0
        %v982 = vsel %vm950, 1, 0
        %v983 = vsel %vm951, 1, 0
        %v984 = vsel %vm952, 1, 0
        %v985 = vsel %vm953, 1, 0
        %v986 = vsel %vm954, 1, 0
        %v987 = vsel %vm955, 1, 0
        %v988 = vsel %vm956, 1, 0
        %v989 = vsel %vm957, 1, 0
        %v990 = vcvt.s32.f32 %v958
        %v991 = vcvt.s32.f32 %v959
        %v992 = vcvt.s32.f32 %v960
        %v993 = vcvt.s32.f32 %v961
        %v994 = vcvt.s32.f32 %v962
        %v995 = vcvt.s32.f32 %v963
        %v996 = vcvt.s32.f32 %v964
        %v997 = vcvt.s32.f32 %v965
        %v998 = vcvt.s32.f32 %v966
        %v999 = vcvt.s32.f32 %v967
        %v1000 = vcvt.s32.f32 %v968
        %v1001 = vcvt.s32.f32 %v969
        %v1002 = vcvt.s32.f32 %v970
        %v1003 = vcvt.s32.f32 %v971
        %v1004 = vcvt.s32.f32 %v972
        %v1005 = vcvt.s32.f32 %v973
        %v1006 = vcvt.s32.f32 %v974
        %v1007 = vcvt.s32.f32 %v975
        %v1008 = vcvt.s32.f32 %v976
        %v1009 = vcvt.s32.f32 %v977
        %v1010 = vcvt.s32.f32 %v978
        %v1011 = vcvt.s32.f32 %v979
        %v1012 = vcvt.s32.f32 %v980
        %v1013 = vcvt.s32.f32 %v981
        %v1014 = vcvt.s32.f32 %v982
        %v1015 = vcvt.s32.f32 %v983
        %v1016 = vcvt.s32.f32 %v984
        %v1017 = vcvt.s32.f32 %v985
        %v1018 = vcvt.s32.f32 %v986
        %v1019 = vcvt.s32.f32 %v987
        %v1020 = vcvt.s32.f32 %v988
        %v1021 = vcvt.s32.f32 %v989
        %v1022 = vadd.f32 %v830, %v990
        %v1023 = vadd.f32 %v831, %v991
        %v1024 = vadd.f32 %v832, %v992
        %v1025 = vadd.f32 %v833, %v993
        %v1026 = vadd.f32 %v834, %v994
        %v1027 = vadd.f32 %v835, %v995
        %v1028 = vadd.f32 %v836, %v996
        %v1029 = vadd.f32 %v837, %v997
        %v1030 = vadd.f32 %v838, %v998
        %v1031 = vadd.f32 %v839, %v999
        %v1032 = vadd.f32 %v840, %v1000
        %v1033 = vadd.f32 %v841, %v1001
        %v1034 = vadd.f32 %v842, %v1002
        %v1035 = vadd.f32 %v843, %v1003
        %v1036 = vadd.f32 %v844, %v1004
        %v1037 = vadd.f32 %v845, %v1005
        %v1038 = vadd.f32 %v846, %v1006
        %v1039 = vadd.f32 %v847, %v1007
        %v1040 = vadd.f32 %v848, %v1008
        %v1041 = vadd.f32 %v849, %v1009
        %v1042 = vadd.f32 %v850, %v1010
        %v1043 = vadd.f32 %v851, %v1011
        %v1044 = vadd.f32 %v852, %v1012
        %v1045 = vadd.f32 %v853, %v1013
        %v1046 = vadd.f32 %v854, %v1014
        %v1047 = vadd.f32 %v855, %v1015
        %v1048 = vadd.f32 %v856, %v1016
        %v1049 = vadd.f32 %v857, %v1017
        %v1050 = vadd.f32 %v858, %v1018
        %v1051 = vadd.f32 %v859, %v1019
        %v1052 = vadd.f32 %v860, %v1020
        %v1053 = vadd.f32 %v861, %v1021
        %v1054 = vadd.s32 %v283, 128
        %v1055 = vadd.s32 %v284, 128
        %v1056 = vadd.s32 %v285, 128
        %v1057 = vadd.s32 %v286, 128
        %v1058 = vadd.s32 %v287, 128
        %v1059 = vadd.s32 %v288, 128
        %v1060 = vadd.s32 %v289, 128
        %v1061 = vadd.s32 %v290, 128
        %v1062 = vadd.s32 %v291, 128
        %v1063 = vadd.s32 %v292, 128
        %v1064 = vadd.s32 %v293, 128
        %v1065 = vadd.s32 %v294, 128
        %v1066 = vadd.s32 %v295, 128
        %v1067 = vadd.s32 %v296, 128
        %v1068 = vadd.s32 %v297, 128
        %v1069 = vadd.s32 %v298, 128
        %1070 = vset.pattern.permute.xlu0 4
        %1071 = vperm.xlu0 %1070, %v1054
        %v1072 = vpop.permute.xlu0 %1071
        %1073 = vset.pattern.permute.xlu0 4
        %1074 = vperm.xlu0 %1073, %v1055
        %v1075 = vpop.permute.xlu0 %1074
        %1076 = vset.pattern.permute.xlu0 4
        %1077 = vperm.xlu0 %1076, %v1056
        %v1078 = vpop.permute.xlu0 %1077
        %1079 = vset.pattern.permute.xlu0 4
        %1080 = vperm.xlu0 %1079, %v1057
        %v1081 = vpop.permute.xlu0 %1080
        %1082 = vset.pattern.permute.xlu0 4
        %1083 = vperm.xlu0 %1082, %v1058
        %v1084 = vpop.permute.xlu0 %1083
        %1085 = vset.pattern.permute.xlu0 4
        %1086 = vperm.xlu0 %1085, %v1059
        %v1087 = vpop.permute.xlu0 %1086
        %1088 = vset.pattern.permute.xlu0 4
        %1089 = vperm.xlu0 %1088, %v1060
        %v1090 = vpop.permute.xlu0 %1089
        %1091 = vset.pattern.permute.xlu0 4
        %1092 = vperm.xlu0 %1091, %v1061
        %v1093 = vpop.permute.xlu0 %1092
        %1094 = vset.pattern.permute.xlu0 4
        %1095 = vperm.xlu0 %1094, %v1062
        %v1096 = vpop.permute.xlu0 %1095
        %1097 = vset.pattern.permute.xlu0 4
        %1098 = vperm.xlu0 %1097, %v1063
        %v1099 = vpop.permute.xlu0 %1098
        %1100 = vset.pattern.permute.xlu0 4
        %1101 = vperm.xlu0 %1100, %v1064
        %v1102 = vpop.permute.xlu0 %1101
        %1103 = vset.pattern.permute.xlu0 4
        %1104 = vperm.xlu0 %1103, %v1065
        %v1105 = vpop.permute.xlu0 %1104
        %1106 = vset.pattern.permute.xlu0 4
        %1107 = vperm.xlu0 %1106, %v1066
        %v1108 = vpop.permute.xlu0 %1107
        %1109 = vset.pattern.permute.xlu0 4
        %1110 = vperm.xlu0 %1109, %v1067
        %v1111 = vpop.permute.xlu0 %1110
        %1112 = vset.pattern.permute.xlu0 4
        %1113 = vperm.xlu0 %1112, %v1068
        %v1114 = vpop.permute.xlu0 %1113
        %1115 = vset.pattern.permute.xlu0 4
        %1116 = vperm.xlu0 %1115, %v1069
        %v1117 = vpop.permute.xlu0 %1116
        %vm1118 = vcmp.eq.s32.totalorder %v300, %v1072
        %vm1119 = vcmp.eq.s32.totalorder %v301, %v1072
        %vm1120 = vcmp.eq.s32.totalorder %v300, %v1075
        %vm1121 = vcmp.eq.s32.totalorder %v301, %v1075
        %vm1122 = vcmp.eq.s32.totalorder %v300, %v1078
        %vm1123 = vcmp.eq.s32.totalorder %v301, %v1078
        %vm1124 = vcmp.eq.s32.totalorder %v300, %v1081
        %vm1125 = vcmp.eq.s32.totalorder %v301, %v1081
        %vm1126 = vcmp.eq.s32.totalorder %v300, %v1084
        %vm1127 = vcmp.eq.s32.totalorder %v301, %v1084
        %vm1128 = vcmp.eq.s32.totalorder %v300, %v1087
        %vm1129 = vcmp.eq.s32.totalorder %v301, %v1087
        %vm1130 = vcmp.eq.s32.totalorder %v300, %v1090
        %vm1131 = vcmp.eq.s32.totalorder %v301, %v1090
        %vm1132 = vcmp.eq.s32.totalorder %v300, %v1093
        %vm1133 = vcmp.eq.s32.totalorder %v301, %v1093
        %vm1134 = vcmp.eq.s32.totalorder %v300, %v1096
        %vm1135 = vcmp.eq.s32.totalorder %v301, %v1096
        %vm1136 = vcmp.eq.s32.totalorder %v300, %v1099
        %vm1137 = vcmp.eq.s32.totalorder %v301, %v1099
        %vm1138 = vcmp.eq.s32.totalorder %v300, %v1102
        %vm1139 = vcmp.eq.s32.totalorder %v301, %v1102
        %vm1140 = vcmp.eq.s32.totalorder %v300, %v1105
        %vm1141 = vcmp.eq.s32.totalorder %v301, %v1105
        %vm1142 = vcmp.eq.s32.totalorder %v300, %v1108
        %vm1143 = vcmp.eq.s32.totalorder %v301, %v1108
        %vm1144 = vcmp.eq.s32.totalorder %v300, %v1111
        %vm1145 = vcmp.eq.s32.totalorder %v301, %v1111
        %vm1146 = vcmp.eq.s32.totalorder %v300, %v1114
        %vm1147 = vcmp.eq.s32.totalorder %v301, %v1114
        %vm1148 = vcmp.eq.s32.totalorder %v300, %v1117
        %vm1149 = vcmp.eq.s32.totalorder %v301, %v1117
        %v1150 = vsel %vm1118, 1, 0
        %v1151 = vsel %vm1119, 1, 0
        %v1152 = vsel %vm1120, 1, 0
        %v1153 = vsel %vm1121, 1, 0
        %v1154 = vsel %vm1122, 1, 0
        %v1155 = vsel %vm1123, 1, 0
        %v1156 = vsel %vm1124, 1, 0
        %v1157 = vsel %vm1125, 1, 0
        %v1158 = vsel %vm1126, 1, 0
        %v1159 = vsel %vm1127, 1, 0
        %v1160 = vsel %vm1128, 1, 0
        %v1161 = vsel %vm1129, 1, 0
        %v1162 = vsel %vm1130, 1, 0
        %v1163 = vsel %vm1131, 1, 0
        %v1164 = vsel %vm1132, 1, 0
        %v1165 = vsel %vm1133, 1, 0
        %v1166 = vsel %vm1134, 1, 0
        %v1167 = vsel %vm1135, 1, 0
        %v1168 = vsel %vm1136, 1, 0
        %v1169 = vsel %vm1137, 1, 0
        %v1170 = vsel %vm1138, 1, 0
        %v1171 = vsel %vm1139, 1, 0
        %v1172 = vsel %vm1140, 1, 0
        %v1173 = vsel %vm1141, 1, 0
        %v1174 = vsel %vm1142, 1, 0
        %v1175 = vsel %vm1143, 1, 0
        %v1176 = vsel %vm1144, 1, 0
        %v1177 = vsel %vm1145, 1, 0
        %v1178 = vsel %vm1146, 1, 0
        %v1179 = vsel %vm1147, 1, 0
        %v1180 = vsel %vm1148, 1, 0
        %v1181 = vsel %vm1149, 1, 0
        %v1182 = vcvt.s32.f32 %v1150
        %v1183 = vcvt.s32.f32 %v1151
        %v1184 = vcvt.s32.f32 %v1152
        %v1185 = vcvt.s32.f32 %v1153
        %v1186 = vcvt.s32.f32 %v1154
        %v1187 = vcvt.s32.f32 %v1155
        %v1188 = vcvt.s32.f32 %v1156
        %v1189 = vcvt.s32.f32 %v1157
        %v1190 = vcvt.s32.f32 %v1158
        %v1191 = vcvt.s32.f32 %v1159
        %v1192 = vcvt.s32.f32 %v1160
        %v1193 = vcvt.s32.f32 %v1161
        %v1194 = vcvt.s32.f32 %v1162
        %v1195 = vcvt.s32.f32 %v1163
        %v1196 = vcvt.s32.f32 %v1164
        %v1197 = vcvt.s32.f32 %v1165
        %v1198 = vcvt.s32.f32 %v1166
        %v1199 = vcvt.s32.f32 %v1167
        %v1200 = vcvt.s32.f32 %v1168
        %v1201 = vcvt.s32.f32 %v1169
        %v1202 = vcvt.s32.f32 %v1170
        %v1203 = vcvt.s32.f32 %v1171
        %v1204 = vcvt.s32.f32 %v1172
        %v1205 = vcvt.s32.f32 %v1173
        %v1206 = vcvt.s32.f32 %v1174
        %v1207 = vcvt.s32.f32 %v1175
        %v1208 = vcvt.s32.f32 %v1176
        %v1209 = vcvt.s32.f32 %v1177
        %v1210 = vcvt.s32.f32 %v1178
        %v1211 = vcvt.s32.f32 %v1179
        %v1212 = vcvt.s32.f32 %v1180
        %v1213 = vcvt.s32.f32 %v1181
        %v1214 = vadd.f32 %v1022, %v1182
        %v1215 = vadd.f32 %v1023, %v1183
        %v1216 = vadd.f32 %v1024, %v1184
        %v1217 = vadd.f32 %v1025, %v1185
        %v1218 = vadd.f32 %v1026, %v1186
        %v1219 = vadd.f32 %v1027, %v1187
        %v1220 = vadd.f32 %v1028, %v1188
        %v1221 = vadd.f32 %v1029, %v1189
        %v1222 = vadd.f32 %v1030, %v1190
        %v1223 = vadd.f32 %v1031, %v1191
        %v1224 = vadd.f32 %v1032, %v1192
        %v1225 = vadd.f32 %v1033, %v1193
        %v1226 = vadd.f32 %v1034, %v1194
        %v1227 = vadd.f32 %v1035, %v1195
        %v1228 = vadd.f32 %v1036, %v1196
        %v1229 = vadd.f32 %v1037, %v1197
        %v1230 = vadd.f32 %v1038, %v1198
        %v1231 = vadd.f32 %v1039, %v1199
        %v1232 = vadd.f32 %v1040, %v1200
        %v1233 = vadd.f32 %v1041, %v1201
        %v1234 = vadd.f32 %v1042, %v1202
        %v1235 = vadd.f32 %v1043, %v1203
        %v1236 = vadd.f32 %v1044, %v1204
        %v1237 = vadd.f32 %v1045, %v1205
        %v1238 = vadd.f32 %v1046, %v1206
        %v1239 = vadd.f32 %v1047, %v1207
        %v1240 = vadd.f32 %v1048, %v1208
        %v1241 = vadd.f32 %v1049, %v1209
        %v1242 = vadd.f32 %v1050, %v1210
        %v1243 = vadd.f32 %v1051, %v1211
        %v1244 = vadd.f32 %v1052, %v1212
        %v1245 = vadd.f32 %v1053, %v1213
        %v1246 = vadd.s32 %v283, 160
        %v1247 = vadd.s32 %v284, 160
        %v1248 = vadd.s32 %v285, 160
        %v1249 = vadd.s32 %v286, 160
        %v1250 = vadd.s32 %v287, 160
        %v1251 = vadd.s32 %v288, 160
        %v1252 = vadd.s32 %v289, 160
        %v1253 = vadd.s32 %v290, 160
        %v1254 = vadd.s32 %v291, 160
        %v1255 = vadd.s32 %v292, 160
        %v1256 = vadd.s32 %v293, 160
        %v1257 = vadd.s32 %v294, 160
        %v1258 = vadd.s32 %v295, 160
        %v1259 = vadd.s32 %v296, 160
        %v1260 = vadd.s32 %v297, 160
        %v1261 = vadd.s32 %v298, 160
        %1262 = vset.pattern.permute.xlu0 5
        %1263 = vperm.xlu0 %1262, %v1246
        %v1264 = vpop.permute.xlu0 %1263
        %1265 = vset.pattern.permute.xlu0 5
        %1266 = vperm.xlu0 %1265, %v1247
        %v1267 = vpop.permute.xlu0 %1266
        %1268 = vset.pattern.permute.xlu0 5
        %1269 = vperm.xlu0 %1268, %v1248
        %v1270 = vpop.permute.xlu0 %1269
        %1271 = vset.pattern.permute.xlu0 5
        %1272 = vperm.xlu0 %1271, %v1249
        %v1273 = vpop.permute.xlu0 %1272
        %1274 = vset.pattern.permute.xlu0 5
        %1275 = vperm.xlu0 %1274, %v1250
        %v1276 = vpop.permute.xlu0 %1275
        %1277 = vset.pattern.permute.xlu0 5
        %1278 = vperm.xlu0 %1277, %v1251
        %v1279 = vpop.permute.xlu0 %1278
        %1280 = vset.pattern.permute.xlu0 5
        %1281 = vperm.xlu0 %1280, %v1252
        %v1282 = vpop.permute.xlu0 %1281
        %1283 = vset.pattern.permute.xlu0 5
        %1284 = vperm.xlu0 %1283, %v1253
        %v1285 = vpop.permute.xlu0 %1284
        %1286 = vset.pattern.permute.xlu0 5
        %1287 = vperm.xlu0 %1286, %v1254
        %v1288 = vpop.permute.xlu0 %1287
        %1289 = vset.pattern.permute.xlu0 5
        %1290 = vperm.xlu0 %1289, %v1255
        %v1291 = vpop.permute.xlu0 %1290
        %1292 = vset.pattern.permute.xlu0 5
        %1293 = vperm.xlu0 %1292, %v1256
        %v1294 = vpop.permute.xlu0 %1293
        %1295 = vset.pattern.permute.xlu0 5
        %1296 = vperm.xlu0 %1295, %v1257
        %v1297 = vpop.permute.xlu0 %1296
        %1298 = vset.pattern.permute.xlu0 5
        %1299 = vperm.xlu0 %1298, %v1258
        %v1300 = vpop.permute.xlu0 %1299
        %1301 = vset.pattern.permute.xlu0 5
        %1302 = vperm.xlu0 %1301, %v1259
        %v1303 = vpop.permute.xlu0 %1302
        %1304 = vset.pattern.permute.xlu0 5
        %1305 = vperm.xlu0 %1304, %v1260
        %v1306 = vpop.permute.xlu0 %1305
        %1307 = vset.pattern.permute.xlu0 5
        %1308 = vperm.xlu0 %1307, %v1261
        %v1309 = vpop.permute.xlu0 %1308
        %vm1310 = vcmp.eq.s32.totalorder %v300, %v1264
        %vm1311 = vcmp.eq.s32.totalorder %v301, %v1264
        %vm1312 = vcmp.eq.s32.totalorder %v300, %v1267
        %vm1313 = vcmp.eq.s32.totalorder %v301, %v1267
        %vm1314 = vcmp.eq.s32.totalorder %v300, %v1270
        %vm1315 = vcmp.eq.s32.totalorder %v301, %v1270
        %vm1316 = vcmp.eq.s32.totalorder %v300, %v1273
        %vm1317 = vcmp.eq.s32.totalorder %v301, %v1273
        %vm1318 = vcmp.eq.s32.totalorder %v300, %v1276
        %vm1319 = vcmp.eq.s32.totalorder %v301, %v1276
        %vm1320 = vcmp.eq.s32.totalorder %v300, %v1279
        %vm1321 = vcmp.eq.s32.totalorder %v301, %v1279
        %vm1322 = vcmp.eq.s32.totalorder %v300, %v1282
        %vm1323 = vcmp.eq.s32.totalorder %v301, %v1282
        %vm1324 = vcmp.eq.s32.totalorder %v300, %v1285
        %vm1325 = vcmp.eq.s32.totalorder %v301, %v1285
        %vm1326 = vcmp.eq.s32.totalorder %v300, %v1288
        %vm1327 = vcmp.eq.s32.totalorder %v301, %v1288
        %vm1328 = vcmp.eq.s32.totalorder %v300, %v1291
        %vm1329 = vcmp.eq.s32.totalorder %v301, %v1291
        %vm1330 = vcmp.eq.s32.totalorder %v300, %v1294
        %vm1331 = vcmp.eq.s32.totalorder %v301, %v1294
        %vm1332 = vcmp.eq.s32.totalorder %v300, %v1297
        %vm1333 = vcmp.eq.s32.totalorder %v301, %v1297
        %vm1334 = vcmp.eq.s32.totalorder %v300, %v1300
        %vm1335 = vcmp.eq.s32.totalorder %v301, %v1300
        %vm1336 = vcmp.eq.s32.totalorder %v300, %v1303
        %vm1337 = vcmp.eq.s32.totalorder %v301, %v1303
        %vm1338 = vcmp.eq.s32.totalorder %v300, %v1306
        %vm1339 = vcmp.eq.s32.totalorder %v301, %v1306
        %vm1340 = vcmp.eq.s32.totalorder %v300, %v1309
        %vm1341 = vcmp.eq.s32.totalorder %v301, %v1309
        %v1342 = vsel %vm1310, 1, 0
        %v1343 = vsel %vm1311, 1, 0
        %v1344 = vsel %vm1312, 1, 0
        %v1345 = vsel %vm1313, 1, 0
        %v1346 = vsel %vm1314, 1, 0
        %v1347 = vsel %vm1315, 1, 0
        %v1348 = vsel %vm1316, 1, 0
        %v1349 = vsel %vm1317, 1, 0
        %v1350 = vsel %vm1318, 1, 0
        %v1351 = vsel %vm1319, 1, 0
        %v1352 = vsel %vm1320, 1, 0
        %v1353 = vsel %vm1321, 1, 0
        %v1354 = vsel %vm1322, 1, 0
        %v1355 = vsel %vm1323, 1, 0
        %v1356 = vsel %vm1324, 1, 0
        %v1357 = vsel %vm1325, 1, 0
        %v1358 = vsel %vm1326, 1, 0
        %v1359 = vsel %vm1327, 1, 0
        %v1360 = vsel %vm1328, 1, 0
        %v1361 = vsel %vm1329, 1, 0
        %v1362 = vsel %vm1330, 1, 0
        %v1363 = vsel %vm1331, 1, 0
        %v1364 = vsel %vm1332, 1, 0
        %v1365 = vsel %vm1333, 1, 0
        %v1366 = vsel %vm1334, 1, 0
        %v1367 = vsel %vm1335, 1, 0
        %v1368 = vsel %vm1336, 1, 0
        %v1369 = vsel %vm1337, 1, 0
        %v1370 = vsel %vm1338, 1, 0
        %v1371 = vsel %vm1339, 1, 0
        %v1372 = vsel %vm1340, 1, 0
        %v1373 = vsel %vm1341, 1, 0
        %v1374 = vcvt.s32.f32 %v1342
        %v1375 = vcvt.s32.f32 %v1343
        %v1376 = vcvt.s32.f32 %v1344
        %v1377 = vcvt.s32.f32 %v1345
        %v1378 = vcvt.s32.f32 %v1346
        %v1379 = vcvt.s32.f32 %v1347
        %v1380 = vcvt.s32.f32 %v1348
        %v1381 = vcvt.s32.f32 %v1349
        %v1382 = vcvt.s32.f32 %v1350
        %v1383 = vcvt.s32.f32 %v1351
        %v1384 = vcvt.s32.f32 %v1352
        %v1385 = vcvt.s32.f32 %v1353
        %v1386 = vcvt.s32.f32 %v1354
        %v1387 = vcvt.s32.f32 %v1355
        %v1388 = vcvt.s32.f32 %v1356
        %v1389 = vcvt.s32.f32 %v1357
        %v1390 = vcvt.s32.f32 %v1358
        %v1391 = vcvt.s32.f32 %v1359
        %v1392 = vcvt.s32.f32 %v1360
        %v1393 = vcvt.s32.f32 %v1361
        %v1394 = vcvt.s32.f32 %v1362
        %v1395 = vcvt.s32.f32 %v1363
        %v1396 = vcvt.s32.f32 %v1364
        %v1397 = vcvt.s32.f32 %v1365
        %v1398 = vcvt.s32.f32 %v1366
        %v1399 = vcvt.s32.f32 %v1367
        %v1400 = vcvt.s32.f32 %v1368
        %v1401 = vcvt.s32.f32 %v1369
        %v1402 = vcvt.s32.f32 %v1370
        %v1403 = vcvt.s32.f32 %v1371
        %v1404 = vcvt.s32.f32 %v1372
        %v1405 = vcvt.s32.f32 %v1373
        %v1406 = vadd.f32 %v1214, %v1374
        %v1407 = vadd.f32 %v1215, %v1375
        %v1408 = vadd.f32 %v1216, %v1376
        %v1409 = vadd.f32 %v1217, %v1377
        %v1410 = vadd.f32 %v1218, %v1378
        %v1411 = vadd.f32 %v1219, %v1379
        %v1412 = vadd.f32 %v1220, %v1380
        %v1413 = vadd.f32 %v1221, %v1381
        %v1414 = vadd.f32 %v1222, %v1382
        %v1415 = vadd.f32 %v1223, %v1383
        %v1416 = vadd.f32 %v1224, %v1384
        %v1417 = vadd.f32 %v1225, %v1385
        %v1418 = vadd.f32 %v1226, %v1386
        %v1419 = vadd.f32 %v1227, %v1387
        %v1420 = vadd.f32 %v1228, %v1388
        %v1421 = vadd.f32 %v1229, %v1389
        %v1422 = vadd.f32 %v1230, %v1390
        %v1423 = vadd.f32 %v1231, %v1391
        %v1424 = vadd.f32 %v1232, %v1392
        %v1425 = vadd.f32 %v1233, %v1393
        %v1426 = vadd.f32 %v1234, %v1394
        %v1427 = vadd.f32 %v1235, %v1395
        %v1428 = vadd.f32 %v1236, %v1396
        %v1429 = vadd.f32 %v1237, %v1397
        %v1430 = vadd.f32 %v1238, %v1398
        %v1431 = vadd.f32 %v1239, %v1399
        %v1432 = vadd.f32 %v1240, %v1400
        %v1433 = vadd.f32 %v1241, %v1401
        %v1434 = vadd.f32 %v1242, %v1402
        %v1435 = vadd.f32 %v1243, %v1403
        %v1436 = vadd.f32 %v1244, %v1404
        %v1437 = vadd.f32 %v1245, %v1405
        %v1438 = vadd.s32 %v283, 192
        %v1439 = vadd.s32 %v284, 192
        %v1440 = vadd.s32 %v285, 192
        %v1441 = vadd.s32 %v286, 192
        %v1442 = vadd.s32 %v287, 192
        %v1443 = vadd.s32 %v288, 192
        %v1444 = vadd.s32 %v289, 192
        %v1445 = vadd.s32 %v290, 192
        %v1446 = vadd.s32 %v291, 192
        %v1447 = vadd.s32 %v292, 192
        %v1448 = vadd.s32 %v293, 192
        %v1449 = vadd.s32 %v294, 192
        %v1450 = vadd.s32 %v295, 192
        %v1451 = vadd.s32 %v296, 192
        %v1452 = vadd.s32 %v297, 192
        %v1453 = vadd.s32 %v298, 192
        %1454 = vset.pattern.permute.xlu0 6
        %1455 = vperm.xlu0 %1454, %v1438
        %v1456 = vpop.permute.xlu0 %1455
        %1457 = vset.pattern.permute.xlu0 6
        %1458 = vperm.xlu0 %1457, %v1439
        %v1459 = vpop.permute.xlu0 %1458
        %1460 = vset.pattern.permute.xlu0 6
        %1461 = vperm.xlu0 %1460, %v1440
        %v1462 = vpop.permute.xlu0 %1461
        %1463 = vset.pattern.permute.xlu0 6
        %1464 = vperm.xlu0 %1463, %v1441
        %v1465 = vpop.permute.xlu0 %1464
        %1466 = vset.pattern.permute.xlu0 6
        %1467 = vperm.xlu0 %1466, %v1442
        %v1468 = vpop.permute.xlu0 %1467
        %1469 = vset.pattern.permute.xlu0 6
        %1470 = vperm.xlu0 %1469, %v1443
        %v1471 = vpop.permute.xlu0 %1470
        %1472 = vset.pattern.permute.xlu0 6
        %1473 = vperm.xlu0 %1472, %v1444
        %v1474 = vpop.permute.xlu0 %1473
        %1475 = vset.pattern.permute.xlu0 6
        %1476 = vperm.xlu0 %1475, %v1445
        %v1477 = vpop.permute.xlu0 %1476
        %1478 = vset.pattern.permute.xlu0 6
        %1479 = vperm.xlu0 %1478, %v1446
        %v1480 = vpop.permute.xlu0 %1479
        %1481 = vset.pattern.permute.xlu0 6
        %1482 = vperm.xlu0 %1481, %v1447
        %v1483 = vpop.permute.xlu0 %1482
        %1484 = vset.pattern.permute.xlu0 6
        %1485 = vperm.xlu0 %1484, %v1448
        %v1486 = vpop.permute.xlu0 %1485
        %1487 = vset.pattern.permute.xlu0 6
        %1488 = vperm.xlu0 %1487, %v1449
        %v1489 = vpop.permute.xlu0 %1488
        %1490 = vset.pattern.permute.xlu0 6
        %1491 = vperm.xlu0 %1490, %v1450
        %v1492 = vpop.permute.xlu0 %1491
        %1493 = vset.pattern.permute.xlu0 6
        %1494 = vperm.xlu0 %1493, %v1451
        %v1495 = vpop.permute.xlu0 %1494
        %1496 = vset.pattern.permute.xlu0 6
        %1497 = vperm.xlu0 %1496, %v1452
        %v1498 = vpop.permute.xlu0 %1497
        %1499 = vset.pattern.permute.xlu0 6
        %1500 = vperm.xlu0 %1499, %v1453
        %v1501 = vpop.permute.xlu0 %1500
        %vm1502 = vcmp.eq.s32.totalorder %v300, %v1456
        %vm1503 = vcmp.eq.s32.totalorder %v301, %v1456
        %vm1504 = vcmp.eq.s32.totalorder %v300, %v1459
        %vm1505 = vcmp.eq.s32.totalorder %v301, %v1459
        %vm1506 = vcmp.eq.s32.totalorder %v300, %v1462
        %vm1507 = vcmp.eq.s32.totalorder %v301, %v1462
        %vm1508 = vcmp.eq.s32.totalorder %v300, %v1465
        %vm1509 = vcmp.eq.s32.totalorder %v301, %v1465
        %vm1510 = vcmp.eq.s32.totalorder %v300, %v1468
        %vm1511 = vcmp.eq.s32.totalorder %v301, %v1468
        %vm1512 = vcmp.eq.s32.totalorder %v300, %v1471
        %vm1513 = vcmp.eq.s32.totalorder %v301, %v1471
        %vm1514 = vcmp.eq.s32.totalorder %v300, %v1474
        %vm1515 = vcmp.eq.s32.totalorder %v301, %v1474
        %vm1516 = vcmp.eq.s32.totalorder %v300, %v1477
        %vm1517 = vcmp.eq.s32.totalorder %v301, %v1477
        %vm1518 = vcmp.eq.s32.totalorder %v300, %v1480
        %vm1519 = vcmp.eq.s32.totalorder %v301, %v1480
        %vm1520 = vcmp.eq.s32.totalorder %v300, %v1483
        %vm1521 = vcmp.eq.s32.totalorder %v301, %v1483
        %vm1522 = vcmp.eq.s32.totalorder %v300, %v1486
        %vm1523 = vcmp.eq.s32.totalorder %v301, %v1486
        %vm1524 = vcmp.eq.s32.totalorder %v300, %v1489
        %vm1525 = vcmp.eq.s32.totalorder %v301, %v1489
        %vm1526 = vcmp.eq.s32.totalorder %v300, %v1492
        %vm1527 = vcmp.eq.s32.totalorder %v301, %v1492
        %vm1528 = vcmp.eq.s32.totalorder %v300, %v1495
        %vm1529 = vcmp.eq.s32.totalorder %v301, %v1495
        %vm1530 = vcmp.eq.s32.totalorder %v300, %v1498
        %vm1531 = vcmp.eq.s32.totalorder %v301, %v1498
        %vm1532 = vcmp.eq.s32.totalorder %v300, %v1501
        %vm1533 = vcmp.eq.s32.totalorder %v301, %v1501
        %v1534 = vsel %vm1502, 1, 0
        %v1535 = vsel %vm1503, 1, 0
        %v1536 = vsel %vm1504, 1, 0
        %v1537 = vsel %vm1505, 1, 0
        %v1538 = vsel %vm1506, 1, 0
        %v1539 = vsel %vm1507, 1, 0
        %v1540 = vsel %vm1508, 1, 0
        %v1541 = vsel %vm1509, 1, 0
        %v1542 = vsel %vm1510, 1, 0
        %v1543 = vsel %vm1511, 1, 0
        %v1544 = vsel %vm1512, 1, 0
        %v1545 = vsel %vm1513, 1, 0
        %v1546 = vsel %vm1514, 1, 0
        %v1547 = vsel %vm1515, 1, 0
        %v1548 = vsel %vm1516, 1, 0
        %v1549 = vsel %vm1517, 1, 0
        %v1550 = vsel %vm1518, 1, 0
        %v1551 = vsel %vm1519, 1, 0
        %v1552 = vsel %vm1520, 1, 0
        %v1553 = vsel %vm1521, 1, 0
        %v1554 = vsel %vm1522, 1, 0
        %v1555 = vsel %vm1523, 1, 0
        %v1556 = vsel %vm1524, 1, 0
        %v1557 = vsel %vm1525, 1, 0
        %v1558 = vsel %vm1526, 1, 0
        %v1559 = vsel %vm1527, 1, 0
        %v1560 = vsel %vm1528, 1, 0
        %v1561 = vsel %vm1529, 1, 0
        %v1562 = vsel %vm1530, 1, 0
        %v1563 = vsel %vm1531, 1, 0
        %v1564 = vsel %vm1532, 1, 0
        %v1565 = vsel %vm1533, 1, 0
        %v1566 = vcvt.s32.f32 %v1534
        %v1567 = vcvt.s32.f32 %v1535
        %v1568 = vcvt.s32.f32 %v1536
        %v1569 = vcvt.s32.f32 %v1537
        %v1570 = vcvt.s32.f32 %v1538
        %v1571 = vcvt.s32.f32 %v1539
        %v1572 = vcvt.s32.f32 %v1540
        %v1573 = vcvt.s32.f32 %v1541
        %v1574 = vcvt.s32.f32 %v1542
        %v1575 = vcvt.s32.f32 %v1543
        %v1576 = vcvt.s32.f32 %v1544
        %v1577 = vcvt.s32.f32 %v1545
        %v1578 = vcvt.s32.f32 %v1546
        %v1579 = vcvt.s32.f32 %v1547
        %v1580 = vcvt.s32.f32 %v1548
        %v1581 = vcvt.s32.f32 %v1549
        %v1582 = vcvt.s32.f32 %v1550
        %v1583 = vcvt.s32.f32 %v1551
        %v1584 = vcvt.s32.f32 %v1552
        %v1585 = vcvt.s32.f32 %v1553
        %v1586 = vcvt.s32.f32 %v1554
        %v1587 = vcvt.s32.f32 %v1555
        %v1588 = vcvt.s32.f32 %v1556
        %v1589 = vcvt.s32.f32 %v1557
        %v1590 = vcvt.s32.f32 %v1558
        %v1591 = vcvt.s32.f32 %v1559
        %v1592 = vcvt.s32.f32 %v1560
        %v1593 = vcvt.s32.f32 %v1561
        %v1594 = vcvt.s32.f32 %v1562
        %v1595 = vcvt.s32.f32 %v1563
        %v1596 = vcvt.s32.f32 %v1564
        %v1597 = vcvt.s32.f32 %v1565
        %v1598 = vadd.f32 %v1406, %v1566
        %v1599 = vadd.f32 %v1407, %v1567
        %v1600 = vadd.f32 %v1408, %v1568
        %v1601 = vadd.f32 %v1409, %v1569
        %v1602 = vadd.f32 %v1410, %v1570
        %v1603 = vadd.f32 %v1411, %v1571
        %v1604 = vadd.f32 %v1412, %v1572
        %v1605 = vadd.f32 %v1413, %v1573
        %v1606 = vadd.f32 %v1414, %v1574
        %v1607 = vadd.f32 %v1415, %v1575
        %v1608 = vadd.f32 %v1416, %v1576
        %v1609 = vadd.f32 %v1417, %v1577
        %v1610 = vadd.f32 %v1418, %v1578
        %v1611 = vadd.f32 %v1419, %v1579
        %v1612 = vadd.f32 %v1420, %v1580
        %v1613 = vadd.f32 %v1421, %v1581
        %v1614 = vadd.f32 %v1422, %v1582
        %v1615 = vadd.f32 %v1423, %v1583
        %v1616 = vadd.f32 %v1424, %v1584
        %v1617 = vadd.f32 %v1425, %v1585
        %v1618 = vadd.f32 %v1426, %v1586
        %v1619 = vadd.f32 %v1427, %v1587
        %v1620 = vadd.f32 %v1428, %v1588
        %v1621 = vadd.f32 %v1429, %v1589
        %v1622 = vadd.f32 %v1430, %v1590
        %v1623 = vadd.f32 %v1431, %v1591
        %v1624 = vadd.f32 %v1432, %v1592
        %v1625 = vadd.f32 %v1433, %v1593
        %v1626 = vadd.f32 %v1434, %v1594
        %v1627 = vadd.f32 %v1435, %v1595
        %v1628 = vadd.f32 %v1436, %v1596
        %v1629 = vadd.f32 %v1437, %v1597
        %v1630 = vadd.s32 %v283, 224
        %v1631 = vadd.s32 %v284, 224
        %v1632 = vadd.s32 %v285, 224
        %v1633 = vadd.s32 %v286, 224
        %v1634 = vadd.s32 %v287, 224
        %v1635 = vadd.s32 %v288, 224
        %v1636 = vadd.s32 %v289, 224
        %v1637 = vadd.s32 %v290, 224
        %v1638 = vadd.s32 %v291, 224
        %v1639 = vadd.s32 %v292, 224
        %v1640 = vadd.s32 %v293, 224
        %v1641 = vadd.s32 %v294, 224
        %v1642 = vadd.s32 %v295, 224
        %v1643 = vadd.s32 %v296, 224
        %v1644 = vadd.s32 %v297, 224
        %v1645 = vadd.s32 %v298, 224
        %1646 = vset.pattern.permute.xlu0 7
        %1647 = vperm.xlu0 %1646, %v1630
        %v1648 = vpop.permute.xlu0 %1647
        %1649 = vset.pattern.permute.xlu0 7
        %1650 = vperm.xlu0 %1649, %v1631
        %v1651 = vpop.permute.xlu0 %1650
        %1652 = vset.pattern.permute.xlu0 7
        %1653 = vperm.xlu0 %1652, %v1632
        %v1654 = vpop.permute.xlu0 %1653
        %1655 = vset.pattern.permute.xlu0 7
        %1656 = vperm.xlu0 %1655, %v1633
        %v1657 = vpop.permute.xlu0 %1656
        %1658 = vset.pattern.permute.xlu0 7
        %1659 = vperm.xlu0 %1658, %v1634
        %v1660 = vpop.permute.xlu0 %1659
        %1661 = vset.pattern.permute.xlu0 7
        %1662 = vperm.xlu0 %1661, %v1635
        %v1663 = vpop.permute.xlu0 %1662
        %1664 = vset.pattern.permute.xlu0 7
        %1665 = vperm.xlu0 %1664, %v1636
        %v1666 = vpop.permute.xlu0 %1665
        %1667 = vset.pattern.permute.xlu0 7
        %1668 = vperm.xlu0 %1667, %v1637
        %v1669 = vpop.permute.xlu0 %1668
        %1670 = vset.pattern.permute.xlu0 7
        %1671 = vperm.xlu0 %1670, %v1638
        %v1672 = vpop.permute.xlu0 %1671
        %1673 = vset.pattern.permute.xlu0 7
        %1674 = vperm.xlu0 %1673, %v1639
        %v1675 = vpop.permute.xlu0 %1674
        %1676 = vset.pattern.permute.xlu0 7
        %1677 = vperm.xlu0 %1676, %v1640
        %v1678 = vpop.permute.xlu0 %1677
        %1679 = vset.pattern.permute.xlu0 7
        %1680 = vperm.xlu0 %1679, %v1641
        %v1681 = vpop.permute.xlu0 %1680
        %1682 = vset.pattern.permute.xlu0 7
        %1683 = vperm.xlu0 %1682, %v1642
        %v1684 = vpop.permute.xlu0 %1683
        %1685 = vset.pattern.permute.xlu0 7
        %1686 = vperm.xlu0 %1685, %v1643
        %v1687 = vpop.permute.xlu0 %1686
        %1688 = vset.pattern.permute.xlu0 7
        %1689 = vperm.xlu0 %1688, %v1644
        %v1690 = vpop.permute.xlu0 %1689
        %1691 = vset.pattern.permute.xlu0 7
        %1692 = vperm.xlu0 %1691, %v1645
        %v1693 = vpop.permute.xlu0 %1692
        %vm1694 = vcmp.eq.s32.totalorder %v300, %v1648
        %vm1695 = vcmp.eq.s32.totalorder %v301, %v1648
        %vm1696 = vcmp.eq.s32.totalorder %v300, %v1651
        %vm1697 = vcmp.eq.s32.totalorder %v301, %v1651
        %vm1698 = vcmp.eq.s32.totalorder %v300, %v1654
        %vm1699 = vcmp.eq.s32.totalorder %v301, %v1654
        %vm1700 = vcmp.eq.s32.totalorder %v300, %v1657
        %vm1701 = vcmp.eq.s32.totalorder %v301, %v1657
        %vm1702 = vcmp.eq.s32.totalorder %v300, %v1660
        %vm1703 = vcmp.eq.s32.totalorder %v301, %v1660
        %vm1704 = vcmp.eq.s32.totalorder %v300, %v1663
        %vm1705 = vcmp.eq.s32.totalorder %v301, %v1663
        %vm1706 = vcmp.eq.s32.totalorder %v300, %v1666
        %vm1707 = vcmp.eq.s32.totalorder %v301, %v1666
        %vm1708 = vcmp.eq.s32.totalorder %v300, %v1669
        %vm1709 = vcmp.eq.s32.totalorder %v301, %v1669
        %vm1710 = vcmp.eq.s32.totalorder %v300, %v1672
        %vm1711 = vcmp.eq.s32.totalorder %v301, %v1672
        %vm1712 = vcmp.eq.s32.totalorder %v300, %v1675
        %vm1713 = vcmp.eq.s32.totalorder %v301, %v1675
        %vm1714 = vcmp.eq.s32.totalorder %v300, %v1678
        %vm1715 = vcmp.eq.s32.totalorder %v301, %v1678
        %vm1716 = vcmp.eq.s32.totalorder %v300, %v1681
        %vm1717 = vcmp.eq.s32.totalorder %v301, %v1681
        %vm1718 = vcmp.eq.s32.totalorder %v300, %v1684
        %vm1719 = vcmp.eq.s32.totalorder %v301, %v1684
        %vm1720 = vcmp.eq.s32.totalorder %v300, %v1687
        %vm1721 = vcmp.eq.s32.totalorder %v301, %v1687
        %vm1722 = vcmp.eq.s32.totalorder %v300, %v1690
        %vm1723 = vcmp.eq.s32.totalorder %v301, %v1690
        %vm1724 = vcmp.eq.s32.totalorder %v300, %v1693
        %vm1725 = vcmp.eq.s32.totalorder %v301, %v1693
        %v1726 = vsel %vm1694, 1, 0
        %v1727 = vsel %vm1695, 1, 0
        %v1728 = vsel %vm1696, 1, 0
        %v1729 = vsel %vm1697, 1, 0
        %v1730 = vsel %vm1698, 1, 0
        %v1731 = vsel %vm1699, 1, 0
        %v1732 = vsel %vm1700, 1, 0
        %v1733 = vsel %vm1701, 1, 0
        %v1734 = vsel %vm1702, 1, 0
        %v1735 = vsel %vm1703, 1, 0
        %v1736 = vsel %vm1704, 1, 0
        %v1737 = vsel %vm1705, 1, 0
        %v1738 = vsel %vm1706, 1, 0
        %v1739 = vsel %vm1707, 1, 0
        %v1740 = vsel %vm1708, 1, 0
        %v1741 = vsel %vm1709, 1, 0
        %v1742 = vsel %vm1710, 1, 0
        %v1743 = vsel %vm1711, 1, 0
        %v1744 = vsel %vm1712, 1, 0
        %v1745 = vsel %vm1713, 1, 0
        %v1746 = vsel %vm1714, 1, 0
        %v1747 = vsel %vm1715, 1, 0
        %v1748 = vsel %vm1716, 1, 0
        %v1749 = vsel %vm1717, 1, 0
        %v1750 = vsel %vm1718, 1, 0
        %v1751 = vsel %vm1719, 1, 0
        %v1752 = vsel %vm1720, 1, 0
        %v1753 = vsel %vm1721, 1, 0
        %v1754 = vsel %vm1722, 1, 0
        %v1755 = vsel %vm1723, 1, 0
        %v1756 = vsel %vm1724, 1, 0
        %v1757 = vsel %vm1725, 1, 0
        %v1758 = vcvt.s32.f32 %v1726
        %v1759 = vcvt.s32.f32 %v1727
        %v1760 = vcvt.s32.f32 %v1728
        %v1761 = vcvt.s32.f32 %v1729
        %v1762 = vcvt.s32.f32 %v1730
        %v1763 = vcvt.s32.f32 %v1731
        %v1764 = vcvt.s32.f32 %v1732
        %v1765 = vcvt.s32.f32 %v1733
        %v1766 = vcvt.s32.f32 %v1734
        %v1767 = vcvt.s32.f32 %v1735
        %v1768 = vcvt.s32.f32 %v1736
        %v1769 = vcvt.s32.f32 %v1737
        %v1770 = vcvt.s32.f32 %v1738
        %v1771 = vcvt.s32.f32 %v1739
        %v1772 = vcvt.s32.f32 %v1740
        %v1773 = vcvt.s32.f32 %v1741
        %v1774 = vcvt.s32.f32 %v1742
        %v1775 = vcvt.s32.f32 %v1743
        %v1776 = vcvt.s32.f32 %v1744
        %v1777 = vcvt.s32.f32 %v1745
        %v1778 = vcvt.s32.f32 %v1746
        %v1779 = vcvt.s32.f32 %v1747
        %v1780 = vcvt.s32.f32 %v1748
        %v1781 = vcvt.s32.f32 %v1749
        %v1782 = vcvt.s32.f32 %v1750
        %v1783 = vcvt.s32.f32 %v1751
        %v1784 = vcvt.s32.f32 %v1752
        %v1785 = vcvt.s32.f32 %v1753
        %v1786 = vcvt.s32.f32 %v1754
        %v1787 = vcvt.s32.f32 %v1755
        %v1788 = vcvt.s32.f32 %v1756
        %v1789 = vcvt.s32.f32 %v1757
        %v1790 = vadd.f32 %v1598, %v1758
        %v1791 = vadd.f32 %v1599, %v1759
        %v1792 = vadd.f32 %v1600, %v1760
        %v1793 = vadd.f32 %v1601, %v1761
        %v1794 = vadd.f32 %v1602, %v1762
        %v1795 = vadd.f32 %v1603, %v1763
        %v1796 = vadd.f32 %v1604, %v1764
        %v1797 = vadd.f32 %v1605, %v1765
        %v1798 = vadd.f32 %v1606, %v1766
        %v1799 = vadd.f32 %v1607, %v1767
        %v1800 = vadd.f32 %v1608, %v1768
        %v1801 = vadd.f32 %v1609, %v1769
        %v1802 = vadd.f32 %v1610, %v1770
        %v1803 = vadd.f32 %v1611, %v1771
        %v1804 = vadd.f32 %v1612, %v1772
        %v1805 = vadd.f32 %v1613, %v1773
        %v1806 = vadd.f32 %v1614, %v1774
        %v1807 = vadd.f32 %v1615, %v1775
        %v1808 = vadd.f32 %v1616, %v1776
        %v1809 = vadd.f32 %v1617, %v1777
        %v1810 = vadd.f32 %v1618, %v1778
        %v1811 = vadd.f32 %v1619, %v1779
        %v1812 = vadd.f32 %v1620, %v1780
        %v1813 = vadd.f32 %v1621, %v1781
        %v1814 = vadd.f32 %v1622, %v1782
        %v1815 = vadd.f32 %v1623, %v1783
        %v1816 = vadd.f32 %v1624, %v1784
        %v1817 = vadd.f32 %v1625, %v1785
        %v1818 = vadd.f32 %v1626, %v1786
        %v1819 = vadd.f32 %v1627, %v1787
        %v1820 = vadd.f32 %v1628, %v1788
        %v1821 = vadd.f32 %v1629, %v1789
        %v1822 = vld [vmem:[%s1] sm:$0xff]
        %v1823 = vld [vmem:[%s1 + $0x8] sm:$0xff]
        %v1824 = vld [vmem:[%s1 + $0x10] sm:$0xff]
        %v1825 = vld [vmem:[%s1 + $0x18] sm:$0xff]
        %v1826 = vld [vmem:[%s1 + $0x20] sm:$0xff]
        %v1827 = vld [vmem:[%s1 + $0x28] sm:$0xff]
        %v1828 = vld [vmem:[%s1 + $0x30] sm:$0xff]
        %v1829 = vld [vmem:[%s1 + $0x38] sm:$0xff]
        %v1830 = vld [vmem:[%s1 + $0x40] sm:$0xff]
        %v1831 = vld [vmem:[%s1 + $0x48] sm:$0xff]
        %v1832 = vld [vmem:[%s1 + $0x50] sm:$0xff]
        %v1833 = vld [vmem:[%s1 + $0x58] sm:$0xff]
        %v1834 = vld [vmem:[%s1 + $0x60] sm:$0xff]
        %v1835 = vld [vmem:[%s1 + $0x68] sm:$0xff]
        %v1836 = vld [vmem:[%s1 + $0x70] sm:$0xff]
        %v1837 = vld [vmem:[%s1 + $0x78] sm:$0xff]
        %v1838 = vld [vmem:[%s1 + $0x80] sm:$0xff]
        %v1839 = vld [vmem:[%s1 + $0x88] sm:$0xff]
        %v1840 = vld [vmem:[%s1 + $0x90] sm:$0xff]
        %v1841 = vld [vmem:[%s1 + $0x98] sm:$0xff]
        %v1842 = vld [vmem:[%s1 + $0xa0] sm:$0xff]
        %v1843 = vld [vmem:[%s1 + $0xa8] sm:$0xff]
        %v1844 = vld [vmem:[%s1 + $0xb0] sm:$0xff]
        %v1845 = vld [vmem:[%s1 + $0xb8] sm:$0xff]
        %v1846 = vld [vmem:[%s1 + $0xc0] sm:$0xff]
        %v1847 = vld [vmem:[%s1 + $0xc8] sm:$0xff]
        %v1848 = vld [vmem:[%s1 + $0xd0] sm:$0xff]
        %v1849 = vld [vmem:[%s1 + $0xd8] sm:$0xff]
        %v1850 = vld [vmem:[%s1 + $0xe0] sm:$0xff]
        %v1851 = vld [vmem:[%s1 + $0xe8] sm:$0xff]
        %v1852 = vld [vmem:[%s1 + $0xf0] sm:$0xff]
        %v1853 = vld [vmem:[%s1 + $0xf8] sm:$0xff]
        %1854 = vmatprep.subr.mxu0 0.0
        %1855 = vmatpush1.msra.mxu0 %v1837
        %1856 = vmatprep.subr.mxu0 0.0
        %1857 = vmatpush1.msra.mxu0 %v1836
        %1858 = vmatprep.subr.mxu0 0.0
        %1859 = vmatpush1.msra.mxu0 %v1835
        %1860 = vmatprep.subr.mxu0 0.0
        %1861 = vmatpush1.msra.mxu0 %v1834
        %1862 = vmatprep.subr.mxu0 0.0
        %1863 = vmatpush1.msra.mxu0 %v1833
        %1864 = vmatprep.subr.mxu0 0.0
        %1865 = vmatpush1.msra.mxu0 %v1832
        %1866 = vmatprep.subr.mxu0 0.0
        %1867 = vmatpush1.msra.mxu0 %v1831
        %1868 = vmatprep.subr.mxu0 0.0
        %1869 = vmatpush1.msra.mxu0 %v1830
        %1870 = vmatprep.subr.mxu0 0.0
        %1871 = vmatpush1.msra.mxu0 %v1829
        %1872 = vmatprep.subr.mxu0 0.0
        %1873 = vmatpush1.msra.mxu0 %v1828
        %1874 = vmatprep.subr.mxu0 0.0
        %1875 = vmatpush1.msra.mxu0 %v1827
        %1876 = vmatprep.subr.mxu0 0.0
        %1877 = vmatpush1.msra.mxu0 %v1826
        %1878 = vmatprep.subr.mxu0 0.0
        %1879 = vmatpush1.msra.mxu0 %v1825
        %1880 = vmatprep.subr.mxu0 0.0
        %1881 = vmatpush1.msra.mxu0 %v1824
        %1882 = vmatprep.subr.mxu0 0.0
        %1883 = vmatpush1.msra.mxu0 %v1823
        %1884 = vmatprep.subr.mxu0 0.0
        %1885 = vmatpush1.msra.mxu0 %v1822
        %1886 = vmatprep.subr.mxu0 0.0
        %1887 = vmatpush2.msra.mxu0 %v1853
        %1888 = vmatprep.subr.mxu0 0.0
        %1889 = vmatpush2.msra.mxu0 %v1852
        %1890 = vmatprep.subr.mxu0 0.0
        %1891 = vmatpush2.msra.mxu0 %v1851
        %1892 = vmatprep.subr.mxu0 0.0
        %1893 = vmatpush2.msra.mxu0 %v1850
        %1894 = vmatprep.subr.mxu0 0.0
        %1895 = vmatpush2.msra.mxu0 %v1849
        %1896 = vmatprep.subr.mxu0 0.0
        %1897 = vmatpush2.msra.mxu0 %v1848
        %1898 = vmatprep.subr.mxu0 0.0
        %1899 = vmatpush2.msra.mxu0 %v1847
        %1900 = vmatprep.subr.mxu0 0.0
        %1901 = vmatpush2.msra.mxu0 %v1846
        %1902 = vmatprep.subr.mxu0 0.0
        %1903 = vmatpush2.msra.mxu0 %v1845
        %1904 = vmatprep.subr.mxu0 0.0
        %1905 = vmatpush2.msra.mxu0 %v1844
        %1906 = vmatprep.subr.mxu0 0.0
        %1907 = vmatpush2.msra.mxu0 %v1843
        %1908 = vmatprep.subr.mxu0 0.0
        %1909 = vmatpush2.msra.mxu0 %v1842
        %1910 = vmatprep.subr.mxu0 0.0
        %1911 = vmatpush2.msra.mxu0 %v1841
        %1912 = vmatprep.subr.mxu0 0.0
        %1913 = vmatpush2.msra.mxu0 %v1840
        %1914 = vmatprep.subr.mxu0 0.0
        %1915 = vmatpush2.msra.mxu0 %v1839
        %1916 = vmatprep.subr.mxu0 0.0
        %1917 = vmatpush2.msra.mxu0 %v1838
        %1918 = vmatprep.mubr.f32.mxu0 %v1791
        %1919 = vmatmul.mubr.f32.gmra.mxu0 %v1790
        %v1920 = vpop.f32.mrf.mxu0
        %v1921 = vadd.f32 0.0, %v1920
        %v1922 = vpop.f32.mrf.mxu0
        %1923 = vmatprep.mubr.f32.mxu0 %v1793
        %1924 = vmatmul.mubr.f32.gmra.mxu0 %v1792
        %v1925 = vpop.f32.mrf.mxu0
        %v1926 = vadd.f32 0.0, %v1925
        %v1927 = vpop.f32.mrf.mxu0
        %1928 = vmatprep.mubr.f32.mxu0 %v1795
        %1929 = vmatmul.mubr.f32.gmra.mxu0 %v1794
        %v1930 = vpop.f32.mrf.mxu0
        %v1931 = vadd.f32 0.0, %v1930
        %v1932 = vpop.f32.mrf.mxu0
        %1933 = vmatprep.mubr.f32.mxu0 %v1797
        %1934 = vmatmul.mubr.f32.gmra.mxu0 %v1796
        %v1935 = vpop.f32.mrf.mxu0
        %v1936 = vadd.f32 0.0, %v1935
        %v1937 = vpop.f32.mrf.mxu0
        %1938 = vmatprep.mubr.f32.mxu0 %v1799
        %1939 = vmatmul.mubr.f32.gmra.mxu0 %v1798
        %v1940 = vpop.f32.mrf.mxu0
        %v1941 = vadd.f32 0.0, %v1940
        %v1942 = vpop.f32.mrf.mxu0
        %1943 = vmatprep.mubr.f32.mxu0 %v1801
        %1944 = vmatmul.mubr.f32.gmra.mxu0 %v1800
        %v1945 = vpop.f32.mrf.mxu0
        %v1946 = vadd.f32 0.0, %v1945
        %v1947 = vpop.f32.mrf.mxu0
        %1948 = vmatprep.mubr.f32.mxu0 %v1803
        %1949 = vmatmul.mubr.f32.gmra.mxu0 %v1802
        %v1950 = vpop.f32.mrf.mxu0
        %v1951 = vadd.f32 0.0, %v1950
        %v1952 = vpop.f32.mrf.mxu0
        %1953 = vmatprep.mubr.f32.mxu0 %v1805
        %1954 = vmatmul.mubr.f32.gmra.mxu0 %v1804
        %v1955 = vpop.f32.mrf.mxu0
        %v1956 = vadd.f32 0.0, %v1955
        %v1957 = vpop.f32.mrf.mxu0
        %1958 = vmatprep.mubr.f32.mxu0 %v1807
        %1959 = vmatmul.mubr.f32.gmra.mxu0 %v1806
        %v1960 = vpop.f32.mrf.mxu0
        %v1961 = vadd.f32 0.0, %v1960
        %v1962 = vpop.f32.mrf.mxu0
        %1963 = vmatprep.mubr.f32.mxu0 %v1809
        %1964 = vmatmul.mubr.f32.gmra.mxu0 %v1808
        %v1965 = vpop.f32.mrf.mxu0
        %v1966 = vadd.f32 0.0, %v1965
        %v1967 = vpop.f32.mrf.mxu0
        %1968 = vmatprep.mubr.f32.mxu0 %v1811
        %1969 = vmatmul.mubr.f32.gmra.mxu0 %v1810
        %v1970 = vpop.f32.mrf.mxu0
        %v1971 = vadd.f32 0.0, %v1970
        %v1972 = vpop.f32.mrf.mxu0
        %1973 = vmatprep.mubr.f32.mxu0 %v1813
        %1974 = vmatmul.mubr.f32.gmra.mxu0 %v1812
        %v1975 = vpop.f32.mrf.mxu0
        %v1976 = vadd.f32 0.0, %v1975
        %v1977 = vpop.f32.mrf.mxu0
        %1978 = vmatprep.mubr.f32.mxu0 %v1815
        %1979 = vmatmul.mubr.f32.gmra.mxu0 %v1814
        %v1980 = vpop.f32.mrf.mxu0
        %v1981 = vadd.f32 0.0, %v1980
        %v1982 = vpop.f32.mrf.mxu0
        %1983 = vmatprep.mubr.f32.mxu0 %v1817
        %1984 = vmatmul.mubr.f32.gmra.mxu0 %v1816
        %v1985 = vpop.f32.mrf.mxu0
        %v1986 = vadd.f32 0.0, %v1985
        %v1987 = vpop.f32.mrf.mxu0
        %1988 = vmatprep.mubr.f32.mxu0 %v1819
        %1989 = vmatmul.mubr.f32.gmra.mxu0 %v1818
        %v1990 = vpop.f32.mrf.mxu0
        %v1991 = vadd.f32 0.0, %v1990
        %v1992 = vpop.f32.mrf.mxu0
        %1993 = vmatprep.mubr.f32.mxu0 %v1821
        %1994 = vmatmul.mubr.f32.gmra.mxu0 %v1820
        %v1995 = vpop.f32.mrf.mxu0
        %v1996 = vadd.f32 0.0, %v1995
        %v1997 = vpop.f32.mrf.mxu0
        %1998 = vdwg.mxu0
        %v1999 = vld [vmem:[#allocation2] sm:$0xff]
        %v2000 = vld [vmem:[#allocation2 + $0x8] sm:$0xff]
        %v2001 = vld [vmem:[#allocation2 + $0x10] sm:$0xff]
        %v2002 = vld [vmem:[#allocation2 + $0x18] sm:$0xff]
        %v2003 = vld [vmem:[#allocation2 + $0x20] sm:$0xff]
        %v2004 = vld [vmem:[#allocation2 + $0x28] sm:$0xff]
        %v2005 = vld [vmem:[#allocation2 + $0x30] sm:$0xff]
        %v2006 = vld [vmem:[#allocation2 + $0x38] sm:$0xff]
        %v2007 = vld [vmem:[#allocation2 + $0x40] sm:$0xff]
        %v2008 = vld [vmem:[#allocation2 + $0x48] sm:$0xff]
        %v2009 = vld [vmem:[#allocation2 + $0x50] sm:$0xff]
        %v2010 = vld [vmem:[#allocation2 + $0x58] sm:$0xff]
        %v2011 = vld [vmem:[#allocation2 + $0x60] sm:$0xff]
        %v2012 = vld [vmem:[#allocation2 + $0x68] sm:$0xff]
        %v2013 = vld [vmem:[#allocation2 + $0x70] sm:$0xff]
        %v2014 = vld [vmem:[#allocation2 + $0x78] sm:$0xff]
        %v2015 = vld [vmem:[%s3] sm:$0x1]
        %v2017 = vlaneseq
        %v2018 = vshrl.u32 %v2017, 7
        %v2019 = vsub.s32 0, %v2018
        %v2020 = vrot.slane %v2015, %v2019
        %2022 = vmatprep.subr.mxu0 0.0
        %2023 = vmatpush1.msra.mxu0 %v2014
        %2024 = vmatprep.subr.mxu0 0.0
        %2025 = vmatpush1.msra.mxu0 %v2013
        %2026 = vmatprep.subr.mxu0 0.0
        %2027 = vmatpush1.msra.mxu0 %v2012
        %2028 = vmatprep.subr.mxu0 0.0
        %2029 = vmatpush1.msra.mxu0 %v2011
        %2030 = vmatprep.subr.mxu0 0.0
        %2031 = vmatpush1.msra.mxu0 %v2010
        %2032 = vmatprep.subr.mxu0 0.0
        %2033 = vmatpush1.msra.mxu0 %v2009
        %2034 = vmatprep.subr.mxu0 0.0
        %2035 = vmatpush1.msra.mxu0 %v2008
        %2036 = vmatprep.subr.mxu0 0.0
        %2037 = vmatpush1.msra.mxu0 %v2007
        %2038 = vmatprep.subr.mxu0 0.0
        %2039 = vmatpush1.msra.mxu0 %v2006
        %2040 = vmatprep.subr.mxu0 0.0
        %2041 = vmatpush1.msra.mxu0 %v2005
        %2042 = vmatprep.subr.mxu0 0.0
        %2043 = vmatpush1.msra.mxu0 %v2004
        %2044 = vmatprep.subr.mxu0 0.0
        %2045 = vmatpush1.msra.mxu0 %v2003
        %2046 = vmatprep.subr.mxu0 0.0
        %2047 = vmatpush1.msra.mxu0 %v2002
        %2048 = vmatprep.subr.mxu0 0.0
        %2049 = vmatpush1.msra.mxu0 %v2001
        %2050 = vmatprep.subr.mxu0 0.0
        %2051 = vmatpush1.msra.mxu0 %v2000
        %2052 = vmatprep.subr.mxu0 0.0
        %2053 = vmatpush1.msra.mxu0 %v1999
        %2054 = vmatprep.subr.mxu0 0.0
        %2055 = vmatpush2.msra.mxu0 0.0
        %2056 = vmatprep.subr.mxu0 0.0
        %2057 = vmatpush2.msra.mxu0 0.0
        %2058 = vmatprep.subr.mxu0 0.0
        %2059 = vmatpush2.msra.mxu0 0.0
        %2060 = vmatprep.subr.mxu0 0.0
        %2061 = vmatpush2.msra.mxu0 0.0
        %2062 = vmatprep.subr.mxu0 0.0
        %2063 = vmatpush2.msra.mxu0 0.0
        %2064 = vmatprep.subr.mxu0 0.0
        %2065 = vmatpush2.msra.mxu0 0.0
        %2066 = vmatprep.subr.mxu0 0.0
        %2067 = vmatpush2.msra.mxu0 0.0
        %2068 = vmatprep.subr.mxu0 0.0
        %2069 = vmatpush2.msra.mxu0 0.0
        %2070 = vmatprep.subr.mxu0 0.0
        %2071 = vmatpush2.msra.mxu0 0.0
        %2072 = vmatprep.subr.mxu0 0.0
        %2073 = vmatpush2.msra.mxu0 0.0
        %2074 = vmatprep.subr.mxu0 0.0
        %2075 = vmatpush2.msra.mxu0 0.0
        %2076 = vmatprep.subr.mxu0 0.0
        %2077 = vmatpush2.msra.mxu0 0.0
        %2078 = vmatprep.subr.mxu0 0.0
        %2079 = vmatpush2.msra.mxu0 0.0
        %2080 = vmatprep.subr.mxu0 0.0
        %2081 = vmatpush2.msra.mxu0 0.0
        %2082 = vmatprep.subr.mxu0 0.0
        %2083 = vmatpush2.msra.mxu0 0.0
        %2084 = vmatprep.subr.mxu0 0.0
        %2085 = vmatpush2.msra.mxu0 0.0
        %2086 = vmatprep.mubr.f32.mxu0 0.0
        %2087 = vmatmul.mubr.f32.gmra.mxu0 %v1921
        %v2088 = vpop.f32.mrf.mxu0
        %v2089 = vadd.f32 %v2020, %v2088
        %v2090 = vpop.f32.mrf.mxu0
        %2091 = vmatprep.mubr.f32.mxu0 0.0
        %2092 = vmatmul.mubr.f32.gmra.mxu0 %v1926
        %v2093 = vpop.f32.mrf.mxu0
        %v2094 = vadd.f32 %v2020, %v2093
        %v2095 = vpop.f32.mrf.mxu0
        %2096 = vmatprep.mubr.f32.mxu0 0.0
        %2097 = vmatmul.mubr.f32.gmra.mxu0 %v1931
        %v2098 = vpop.f32.mrf.mxu0
        %v2099 = vadd.f32 %v2020, %v2098
        %v2100 = vpop.f32.mrf.mxu0
        %2101 = vmatprep.mubr.f32.mxu0 0.0
        %2102 = vmatmul.mubr.f32.gmra.mxu0 %v1936
        %v2103 = vpop.f32.mrf.mxu0
        %v2104 = vadd.f32 %v2020, %v2103
        %v2105 = vpop.f32.mrf.mxu0
        %2106 = vmatprep.mubr.f32.mxu0 0.0
        %2107 = vmatmul.mubr.f32.gmra.mxu0 %v1941
        %v2108 = vpop.f32.mrf.mxu0
        %v2109 = vadd.f32 %v2020, %v2108
        %v2110 = vpop.f32.mrf.mxu0
        %2111 = vmatprep.mubr.f32.mxu0 0.0
        %2112 = vmatmul.mubr.f32.gmra.mxu0 %v1946
        %v2113 = vpop.f32.mrf.mxu0
        %v2114 = vadd.f32 %v2020, %v2113
        %v2115 = vpop.f32.mrf.mxu0
        %2116 = vmatprep.mubr.f32.mxu0 0.0
        %2117 = vmatmul.mubr.f32.gmra.mxu0 %v1951
        %v2118 = vpop.f32.mrf.mxu0
        %v2119 = vadd.f32 %v2020, %v2118
        %v2120 = vpop.f32.mrf.mxu0
        %2121 = vmatprep.mubr.f32.mxu0 0.0
        %2122 = vmatmul.mubr.f32.gmra.mxu0 %v1956
        %v2123 = vpop.f32.mrf.mxu0
        %v2124 = vadd.f32 %v2020, %v2123
        %v2125 = vpop.f32.mrf.mxu0
        %2126 = vmatprep.mubr.f32.mxu0 0.0
        %2127 = vmatmul.mubr.f32.gmra.mxu0 %v1961
        %v2128 = vpop.f32.mrf.mxu0
        %v2129 = vadd.f32 %v2020, %v2128
        %v2130 = vpop.f32.mrf.mxu0
        %2131 = vmatprep.mubr.f32.mxu0 0.0
        %2132 = vmatmul.mubr.f32.gmra.mxu0 %v1966
        %v2133 = vpop.f32.mrf.mxu0
        %v2134 = vadd.f32 %v2020, %v2133
        %v2135 = vpop.f32.mrf.mxu0
        %2136 = vmatprep.mubr.f32.mxu0 0.0
        %2137 = vmatmul.mubr.f32.gmra.mxu0 %v1971
        %v2138 = vpop.f32.mrf.mxu0
        %v2139 = vadd.f32 %v2020, %v2138
        %v2140 = vpop.f32.mrf.mxu0
        %2141 = vmatprep.mubr.f32.mxu0 0.0
        %2142 = vmatmul.mubr.f32.gmra.mxu0 %v1976
        %v2143 = vpop.f32.mrf.mxu0
        %v2144 = vadd.f32 %v2020, %v2143
        %v2145 = vpop.f32.mrf.mxu0
        %2146 = vmatprep.mubr.f32.mxu0 0.0
        %2147 = vmatmul.mubr.f32.gmra.mxu0 %v1981
        %v2148 = vpop.f32.mrf.mxu0
        %v2149 = vadd.f32 %v2020, %v2148
        %v2150 = vpop.f32.mrf.mxu0
        %2151 = vmatprep.mubr.f32.mxu0 0.0
        %2152 = vmatmul.mubr.f32.gmra.mxu0 %v1986
        %v2153 = vpop.f32.mrf.mxu0
        %v2154 = vadd.f32 %v2020, %v2153
        %v2155 = vpop.f32.mrf.mxu0
        %2156 = vmatprep.mubr.f32.mxu0 0.0
        %2157 = vmatmul.mubr.f32.gmra.mxu0 %v1991
        %v2158 = vpop.f32.mrf.mxu0
        %v2159 = vadd.f32 %v2020, %v2158
        %v2160 = vpop.f32.mrf.mxu0
        %2161 = vmatprep.mubr.f32.mxu0 0.0
        %2162 = vmatmul.mubr.f32.gmra.mxu0 %v1996
        %v2163 = vpop.f32.mrf.mxu0
        %v2164 = vadd.f32 %v2020, %v2163
        %v2165 = vpop.f32.mrf.mxu0
        %2166 = vdwg.mxu0
        %v2167 = vmax.f32 %v2089, 0.0
        %v2168 = vmax.f32 %v2094, 0.0
        %v2169 = vmax.f32 %v2099, 0.0
        %v2170 = vmax.f32 %v2104, 0.0
        %v2171 = vmax.f32 %v2109, 0.0
        %v2172 = vmax.f32 %v2114, 0.0
        %v2173 = vmax.f32 %v2119, 0.0
        %v2174 = vmax.f32 %v2124, 0.0
        %v2175 = vmax.f32 %v2129, 0.0
        %v2176 = vmax.f32 %v2134, 0.0
        %v2177 = vmax.f32 %v2139, 0.0
        %v2178 = vmax.f32 %v2144, 0.0
        %v2179 = vmax.f32 %v2149, 0.0
        %v2180 = vmax.f32 %v2154, 0.0
        %v2181 = vmax.f32 %v2159, 0.0
        %v2182 = vmax.f32 %v2164, 0.0
        %v2183 = vld [vmem:[#allocation5] sm:$0xff]
        %v2184 = vld [vmem:[#allocation5 + $0x8] sm:$0xff]
        %v2185 = vld [vmem:[#allocation5 + $0x10] sm:$0xff]
        %v2186 = vld [vmem:[#allocation5 + $0x18] sm:$0xff]
        %v2187 = vld [vmem:[#allocation5 + $0x20] sm:$0xff]
        %v2188 = vld [vmem:[#allocation5 + $0x28] sm:$0xff]
        %v2189 = vld [vmem:[#allocation5 + $0x30] sm:$0xff]
        %v2190 = vld [vmem:[#allocation5 + $0x38] sm:$0xff]
        %v2191 = vld [vmem:[#allocation5 + $0x40] sm:$0xff]
        %v2192 = vld [vmem:[#allocation5 + $0x48] sm:$0xff]
        %v2193 = vld [vmem:[#allocation5 + $0x50] sm:$0xff]
        %v2194 = vld [vmem:[#allocation5 + $0x58] sm:$0xff]
        %v2195 = vld [vmem:[#allocation5 + $0x60] sm:$0xff]
        %v2196 = vld [vmem:[#allocation5 + $0x68] sm:$0xff]
        %v2197 = vld [vmem:[#allocation5 + $0x70] sm:$0xff]
        %v2198 = vld [vmem:[#allocation5 + $0x78] sm:$0xff]
        %v2199 = vld [vmem:[%s5] sm:$0x1]
        %v2201 = vlaneseq
        %v2202 = vshrl.u32 %v2201, 7
        %v2203 = vsub.s32 0, %v2202
        %v2204 = vrot.slane %v2199, %v2203
        %2206 = vmatprep.subr.mxu0 0.0
        %2207 = vmatpush1.msra.mxu0 %v2198
        %2208 = vmatprep.subr.mxu0 0.0
        %2209 = vmatpush1.msra.mxu0 %v2197
        %2210 = vmatprep.subr.mxu0 0.0
        %2211 = vmatpush1.msra.mxu0 %v2196
        %2212 = vmatprep.subr.mxu0 0.0
        %2213 = vmatpush1.msra.mxu0 %v2195
        %2214 = vmatprep.subr.mxu0 0.0
        %2215 = vmatpush1.msra.mxu0 %v2194
        %2216 = vmatprep.subr.mxu0 0.0
        %2217 = vmatpush1.msra.mxu0 %v2193
        %2218 = vmatprep.subr.mxu0 0.0
        %2219 = vmatpush1.msra.mxu0 %v2192
        %2220 = vmatprep.subr.mxu0 0.0
        %2221 = vmatpush1.msra.mxu0 %v2191
        %2222 = vmatprep.subr.mxu0 0.0
        %2223 = vmatpush1.msra.mxu0 %v2190
        %2224 = vmatprep.subr.mxu0 0.0
        %2225 = vmatpush1.msra.mxu0 %v2189
        %2226 = vmatprep.subr.mxu0 0.0
        %2227 = vmatpush1.msra.mxu0 %v2188
        %2228 = vmatprep.subr.mxu0 0.0
        %2229 = vmatpush1.msra.mxu0 %v2187
        %2230 = vmatprep.subr.mxu0 0.0
        %2231 = vmatpush1.msra.mxu0 %v2186
        %2232 = vmatprep.subr.mxu0 0.0
        %2233 = vmatpush1.msra.mxu0 %v2185
        %2234 = vmatprep.subr.mxu0 0.0
        %2235 = vmatpush1.msra.mxu0 %v2184
        %2236 = vmatprep.subr.mxu0 0.0
        %2237 = vmatpush1.msra.mxu0 %v2183
        %2238 = vmatprep.subr.mxu0 0.0
        %2239 = vmatpush2.msra.mxu0 0.0
        %2240 = vmatprep.subr.mxu0 0.0
        %2241 = vmatpush2.msra.mxu0 0.0
        %2242 = vmatprep.subr.mxu0 0.0
        %2243 = vmatpush2.msra.mxu0 0.0
        %2244 = vmatprep.subr.mxu0 0.0
        %2245 = vmatpush2.msra.mxu0 0.0
        %2246 = vmatprep.subr.mxu0 0.0
        %2247 = vmatpush2.msra.mxu0 0.0
        %2248 = vmatprep.subr.mxu0 0.0
        %2249 = vmatpush2.msra.mxu0 0.0
        %2250 = vmatprep.subr.mxu0 0.0
        %2251 = vmatpush2.msra.mxu0 0.0
        %2252 = vmatprep.subr.mxu0 0.0
        %2253 = vmatpush2.msra.mxu0 0.0
        %2254 = vmatprep.subr.mxu0 0.0
        %2255 = vmatpush2.msra.mxu0 0.0
        %2256 = vmatprep.subr.mxu0 0.0
        %2257 = vmatpush2.msra.mxu0 0.0
        %2258 = vmatprep.subr.mxu0 0.0
        %2259 = vmatpush2.msra.mxu0 0.0
        %2260 = vmatprep.subr.mxu0 0.0
        %2261 = vmatpush2.msra.mxu0 0.0
        %2262 = vmatprep.subr.mxu0 0.0
        %2263 = vmatpush2.msra.mxu0 0.0
        %2264 = vmatprep.subr.mxu0 0.0
        %2265 = vmatpush2.msra.mxu0 0.0
        %2266 = vmatprep.subr.mxu0 0.0
        %2267 = vmatpush2.msra.mxu0 0.0
        %2268 = vmatprep.subr.mxu0 0.0
        %2269 = vmatpush2.msra.mxu0 0.0
        %2270 = vmatprep.mubr.f32.mxu0 0.0
        %2271 = vmatmul.mubr.f32.gmra.mxu0 %v2167
        %v2272 = vpop.f32.mrf.mxu0
        %v2273 = vadd.f32 %v2204, %v2272
        %v2274 = vpop.f32.mrf.mxu0
        %2275 = vmatprep.mubr.f32.mxu0 0.0
        %2276 = vmatmul.mubr.f32.gmra.mxu0 %v2168
        %v2277 = vpop.f32.mrf.mxu0
        %v2278 = vadd.f32 %v2204, %v2277
        %v2279 = vpop.f32.mrf.mxu0
        %2280 = vmatprep.mubr.f32.mxu0 0.0
        %2281 = vmatmul.mubr.f32.gmra.mxu0 %v2169
        %v2282 = vpop.f32.mrf.mxu0
        %v2283 = vadd.f32 %v2204, %v2282
        %v2284 = vpop.f32.mrf.mxu0
        %2285 = vmatprep.mubr.f32.mxu0 0.0
        %2286 = vmatmul.mubr.f32.gmra.mxu0 %v2170
        %v2287 = vpop.f32.mrf.mxu0
        %v2288 = vadd.f32 %v2204, %v2287
        %v2289 = vpop.f32.mrf.mxu0
        %2290 = vmatprep.mubr.f32.mxu0 0.0
        %2291 = vmatmul.mubr.f32.gmra.mxu0 %v2171
        %v2292 = vpop.f32.mrf.mxu0
        %v2293 = vadd.f32 %v2204, %v2292
        %v2294 = vpop.f32.mrf.mxu0
        %2295 = vmatprep.mubr.f32.mxu0 0.0
        %2296 = vmatmul.mubr.f32.gmra.mxu0 %v2172
        %v2297 = vpop.f32.mrf.mxu0
        %v2298 = vadd.f32 %v2204, %v2297
        %v2299 = vpop.f32.mrf.mxu0
        %2300 = vmatprep.mubr.f32.mxu0 0.0
        %2301 = vmatmul.mubr.f32.gmra.mxu0 %v2173
        %v2302 = vpop.f32.mrf.mxu0
        %v2303 = vadd.f32 %v2204, %v2302
        %v2304 = vpop.f32.mrf.mxu0
        %2305 = vmatprep.mubr.f32.mxu0 0.0
        %2306 = vmatmul.mubr.f32.gmra.mxu0 %v2174
        %v2307 = vpop.f32.mrf.mxu0
        %v2308 = vadd.f32 %v2204, %v2307
        %v2309 = vpop.f32.mrf.mxu0
        %2310 = vmatprep.mubr.f32.mxu0 0.0
        %2311 = vmatmul.mubr.f32.gmra.mxu0 %v2175
        %v2312 = vpop.f32.mrf.mxu0
        %v2313 = vadd.f32 %v2204, %v2312
        %v2314 = vpop.f32.mrf.mxu0
        %2315 = vmatprep.mubr.f32.mxu0 0.0
        %2316 = vmatmul.mubr.f32.gmra.mxu0 %v2176
        %v2317 = vpop.f32.mrf.mxu0
        %v2318 = vadd.f32 %v2204, %v2317
        %v2319 = vpop.f32.mrf.mxu0
        %2320 = vmatprep.mubr.f32.mxu0 0.0
        %2321 = vmatmul.mubr.f32.gmra.mxu0 %v2177
        %v2322 = vpop.f32.mrf.mxu0
        %v2323 = vadd.f32 %v2204, %v2322
        %v2324 = vpop.f32.mrf.mxu0
        %2325 = vmatprep.mubr.f32.mxu0 0.0
        %2326 = vmatmul.mubr.f32.gmra.mxu0 %v2178
        %v2327 = vpop.f32.mrf.mxu0
        %v2328 = vadd.f32 %v2204, %v2327
        %v2329 = vpop.f32.mrf.mxu0
        %2330 = vmatprep.mubr.f32.mxu0 0.0
        %2331 = vmatmul.mubr.f32.gmra.mxu0 %v2179
        %v2332 = vpop.f32.mrf.mxu0
        %v2333 = vadd.f32 %v2204, %v2332
        %v2334 = vpop.f32.mrf.mxu0
        %2335 = vmatprep.mubr.f32.mxu0 0.0
        %2336 = vmatmul.mubr.f32.gmra.mxu0 %v2180
        %v2337 = vpop.f32.mrf.mxu0
        %v2338 = vadd.f32 %v2204, %v2337
        %v2339 = vpop.f32.mrf.mxu0
        %2340 = vmatprep.mubr.f32.mxu0 0.0
        %2341 = vmatmul.mubr.f32.gmra.mxu0 %v2181
        %v2342 = vpop.f32.mrf.mxu0
        %v2343 = vadd.f32 %v2204, %v2342
        %v2344 = vpop.f32.mrf.mxu0
        %2345 = vmatprep.mubr.f32.mxu0 0.0
        %2346 = vmatmul.mubr.f32.gmra.mxu0 %v2182
        %v2347 = vpop.f32.mrf.mxu0
        %v2348 = vadd.f32 %v2204, %v2347
        %v2349 = vpop.f32.mrf.mxu0
        %2350 = vdwg.mxu0
        %2351 = vmax.xlane.f32.xlu0 %v2273
        %v2352 = vpop.xlane.xlu0 %2351
        %2353 = vmax.xlane.f32.xlu0 %v2278
        %v2354 = vpop.xlane.xlu0 %2353
        %2355 = vmax.xlane.f32.xlu0 %v2283
        %v2356 = vpop.xlane.xlu0 %2355
        %2357 = vmax.xlane.f32.xlu0 %v2288
        %v2358 = vpop.xlane.xlu0 %2357
        %2359 = vmax.xlane.f32.xlu0 %v2293
        %v2360 = vpop.xlane.xlu0 %2359
        %2361 = vmax.xlane.f32.xlu0 %v2298
        %v2362 = vpop.xlane.xlu0 %2361
        %2363 = vmax.xlane.f32.xlu0 %v2303
        %v2364 = vpop.xlane.xlu0 %2363
        %2365 = vmax.xlane.f32.xlu0 %v2308
        %v2366 = vpop.xlane.xlu0 %2365
        %2367 = vmax.xlane.f32.xlu0 %v2313
        %v2368 = vpop.xlane.xlu0 %2367
        %2369 = vmax.xlane.f32.xlu0 %v2318
        %v2370 = vpop.xlane.xlu0 %2369
        %2371 = vmax.xlane.f32.xlu0 %v2323
        %v2372 = vpop.xlane.xlu0 %2371
        %2373 = vmax.xlane.f32.xlu0 %v2328
        %v2374 = vpop.xlane.xlu0 %2373
        %2375 = vmax.xlane.f32.xlu0 %v2333
        %v2376 = vpop.xlane.xlu0 %2375
        %2377 = vmax.xlane.f32.xlu0 %v2338
        %v2378 = vpop.xlane.xlu0 %2377
        %2379 = vmax.xlane.f32.xlu0 %v2343
        %v2380 = vpop.xlane.xlu0 %2379
        %2381 = vmax.xlane.f32.xlu0 %v2348
        %v2382 = vpop.xlane.xlu0 %2381
        %v2383 = vsub.f32 %v2273, %v2352
        %v2384 = vsub.f32 %v2278, %v2354
        %v2385 = vsub.f32 %v2283, %v2356
        %v2386 = vsub.f32 %v2288, %v2358
        %v2387 = vsub.f32 %v2293, %v2360
        %v2388 = vsub.f32 %v2298, %v2362
        %v2389 = vsub.f32 %v2303, %v2364
        %v2390 = vsub.f32 %v2308, %v2366
        %v2391 = vsub.f32 %v2313, %v2368
        %v2392 = vsub.f32 %v2318, %v2370
        %v2393 = vsub.f32 %v2323, %v2372
        %v2394 = vsub.f32 %v2328, %v2374
        %v2395 = vsub.f32 %v2333, %v2376
        %v2396 = vsub.f32 %v2338, %v2378
        %v2397 = vsub.f32 %v2343, %v2380
        %v2398 = vsub.f32 %v2348, %v2382
        %v2399 = vmul.f32 %v2383, 1.442695
        %v2400 = vpow.pop %v2399
        %v2401 = vmul.f32 %v2384, 1.442695
        %v2402 = vpow.pop %v2401
        %v2403 = vmul.f32 %v2385, 1.442695
        %v2404 = vpow.pop %v2403
        %v2405 = vmul.f32 %v2386, 1.442695
        %v2406 = vpow.pop %v2405
        %v2407 = vmul.f32 %v2387, 1.442695
        %v2408 = vpow.pop %v2407
        %v2409 = vmul.f32 %v2388, 1.442695
        %v2410 = vpow.pop %v2409
        %v2411 = vmul.f32 %v2389, 1.442695
        %v2412 = vpow.pop %v2411
        %v2413 = vmul.f32 %v2390, 1.442695
        %v2414 = vpow.pop %v2413
        %v2415 = vmul.f32 %v2391, 1.442695
        %v2416 = vpow.pop %v2415
        %v2417 = vmul.f32 %v2392, 1.442695
        %v2418 = vpow.pop %v2417
        %v2419 = vmul.f32 %v2393, 1.442695
        %v2420 = vpow.pop %v2419
        %v2421 = vmul.f32 %v2394, 1.442695
        %v2422 = vpow.pop %v2421
        %v2423 = vmul.f32 %v2395, 1.442695
        %v2424 = vpow.pop %v2423
        %v2425 = vmul.f32 %v2396, 1.442695
        %v2426 = vpow.pop %v2425
        %v2427 = vmul.f32 %v2397, 1.442695
        %v2428 = vpow.pop %v2427
        %v2429 = vmul.f32 %v2398, 1.442695
        %v2430 = vpow.pop %v2429
        %2431 = vadd.xlane.f32.xlu0 %v2400
        %v2432 = vpop.xlane.xlu0 %2431
        %2433 = vadd.xlane.f32.xlu0 %v2402
        %v2434 = vpop.xlane.xlu0 %2433
        %2435 = vadd.xlane.f32.xlu0 %v2404
        %v2436 = vpop.xlane.xlu0 %2435
        %2437 = vadd.xlane.f32.xlu0 %v2406
        %v2438 = vpop.xlane.xlu0 %2437
        %2439 = vadd.xlane.f32.xlu0 %v2408
        %v2440 = vpop.xlane.xlu0 %2439
        %2441 = vadd.xlane.f32.xlu0 %v2410
        %v2442 = vpop.xlane.xlu0 %2441
        %2443 = vadd.xlane.f32.xlu0 %v2412
        %v2444 = vpop.xlane.xlu0 %2443
        %2445 = vadd.xlane.f32.xlu0 %v2414
        %v2446 = vpop.xlane.xlu0 %2445
        %2447 = vadd.xlane.f32.xlu0 %v2416
        %v2448 = vpop.xlane.xlu0 %2447
        %2449 = vadd.xlane.f32.xlu0 %v2418
        %v2450 = vpop.xlane.xlu0 %2449
        %2451 = vadd.xlane.f32.xlu0 %v2420
        %v2452 = vpop.xlane.xlu0 %2451
        %2453 = vadd.xlane.f32.xlu0 %v2422
        %v2454 = vpop.xlane.xlu0 %2453
        %2455 = vadd.xlane.f32.xlu0 %v2424
        %v2456 = vpop.xlane.xlu0 %2455
        %2457 = vadd.xlane.f32.xlu0 %v2426
        %v2458 = vpop.xlane.xlu0 %2457
        %2459 = vadd.xlane.f32.xlu0 %v2428
        %v2460 = vpop.xlane.xlu0 %2459
        %2461 = vadd.xlane.f32.xlu0 %v2430
        %v2462 = vpop.xlane.xlu0 %2461
        %v2463 = vlog2.pop %v2432
        %v2464 = vmul.f32 %v2463, 0.6931472
        %v2465 = vlog2.pop %v2434
        %v2466 = vmul.f32 %v2465, 0.6931472
        %v2467 = vlog2.pop %v2436
        %v2468 = vmul.f32 %v2467, 0.6931472
        %v2469 = vlog2.pop %v2438
        %v2470 = vmul.f32 %v2469, 0.6931472
        %v2471 = vlog2.pop %v2440
        %v2472 = vmul.f32 %v2471, 0.6931472
        %v2473 = vlog2.pop %v2442
        %v2474 = vmul.f32 %v2473, 0.6931472
        %v2475 = vlog2.pop %v2444
        %v2476 = vmul.f32 %v2475, 0.6931472
        %v2477 = vlog2.pop %v2446
        %v2478 = vmul.f32 %v2477, 0.6931472
        %v2479 = vlog2.pop %v2448
        %v2480 = vmul.f32 %v2479, 0.6931472
        %v2481 = vlog2.pop %v2450
        %v2482 = vmul.f32 %v2481, 0.6931472
        %v2483 = vlog2.pop %v2452
        %v2484 = vmul.f32 %v2483, 0.6931472
        %v2485 = vlog2.pop %v2454
        %v2486 = vmul.f32 %v2485, 0.6931472
        %v2487 = vlog2.pop %v2456
        %v2488 = vmul.f32 %v2487, 0.6931472
        %v2489 = vlog2.pop %v2458
        %v2490 = vmul.f32 %v2489, 0.6931472
        %v2491 = vlog2.pop %v2460
        %v2492 = vmul.f32 %v2491, 0.6931472
        %v2493 = vlog2.pop %v2462
        %v2494 = vmul.f32 %v2493, 0.6931472
        %v2495 = vsub.f32 %v2383, %v2464
        %v2496 = vsub.f32 %v2384, %v2466
        %v2497 = vsub.f32 %v2385, %v2468
        %v2498 = vsub.f32 %v2386, %v2470
        %v2499 = vsub.f32 %v2387, %v2472
        %v2500 = vsub.f32 %v2388, %v2474
        %v2501 = vsub.f32 %v2389, %v2476
        %v2502 = vsub.f32 %v2390, %v2478
        %v2503 = vsub.f32 %v2391, %v2480
        %v2504 = vsub.f32 %v2392, %v2482
        %v2505 = vsub.f32 %v2393, %v2484
        %v2506 = vsub.f32 %v2394, %v2486
        %v2507 = vsub.f32 %v2395, %v2488
        %v2508 = vsub.f32 %v2396, %v2490
        %v2509 = vsub.f32 %v2397, %v2492
        %v2510 = vsub.f32 %v2398, %v2494
        %2511 = vst [vmem:[%s275] sm:$0xff] %v2495
        %2512 = vst [vmem:[%s275 + $0x8] sm:$0xff] %v2496
        %2513 = vst [vmem:[%s275 + $0x10] sm:$0xff] %v2497
        %2514 = vst [vmem:[%s275 + $0x18] sm:$0xff] %v2498
        %2515 = vst [vmem:[%s275 + $0x20] sm:$0xff] %v2499
        %2516 = vst [vmem:[%s275 + $0x28] sm:$0xff] %v2500
        %2517 = vst [vmem:[%s275 + $0x30] sm:$0xff] %v2501
        %2518 = vst [vmem:[%s275 + $0x38] sm:$0xff] %v2502
        %2519 = vst [vmem:[%s275 + $0x40] sm:$0xff] %v2503
        %2520 = vst [vmem:[%s275 + $0x48] sm:$0xff] %v2504
        %2521 = vst [vmem:[%s275 + $0x50] sm:$0xff] %v2505
        %2522 = vst [vmem:[%s275 + $0x58] sm:$0xff] %v2506
        %2523 = vst [vmem:[%s275 + $0x60] sm:$0xff] %v2507
        %2524 = vst [vmem:[%s275 + $0x68] sm:$0xff] %v2508
        %2525 = vst [vmem:[%s275 + $0x70] sm:$0xff] %v2509
        %2526 = vst [vmem:[%s275 + $0x78] sm:$0xff] %v2510
        %s2527 = sand.u32 %s161, 1
        %s2528 = scalar_lea.sflag [#allocation4], %s2527
        %s2529 = sand.u32 %s161, 1
        %s2530 = smul.addr %s2529, 128
        %s2531 = scalar_lea.vmem [#allocation7], %s2530
        // Predicated region
        $region53: #{tpu_custom_call.1} parent=43 // pred_check
          %p2532 = pneg %p171
        $region54: #{tpu_custom_call.1} parent=43 // pred_check_branch
          %2534 = sbr.rel (%p2532) target = $region56
        $region55: #{tpu_custom_call.1} parent=43 // pred_region
          %s2535 = smul.u32 16, %s22
          %s2537 = ssub.s32 2048, 2048
          %2538 = vsyncadd %s2528, %s2537
          %s2539 = smul.addr %s2535, 128
          %s2540 = scalar_lea.hbm %s6, %s2539
          %s2541 = sshll.u32 %s2531, 4
          %s2542 = int_to_ptr.vmem [resolvable:$true] %s2541
          %2547 = dma.vmem_to_hbm [thread:$0]  %s2542, 2048, %s2540, %s2528, 128, 128, 8
        $region56: #{tpu_custom_call.1} parent=43 // pred_fallthru
          _
      $region44: #{tpu_custom_call.1} parent=5 // pred_fallthru
        _
      %p2548 = scmp.le.s32.totalorder 2, %s17
      // Predicated region
      $region57: #{tpu_custom_call.1} parent=5 // pred_check
        %p2549 = pneg %p2548
      $region58: #{tpu_custom_call.1} parent=5 // pred_check_branch
        %2551 = sbr.rel (%p2549) target = $region60
      $region59: #{tpu_custom_call.1} parent=5 // pred_region
        %s2552 = ssub.s32 %s17, 2
        // Predicated region
        $region61: #{tpu_custom_call.1} parent=59 // pred_check
          %p2553 = pneg %p177
        $region62: #{tpu_custom_call.1} parent=59 // pred_check_branch
          %2555 = sbr.rel (%p2553) target = $region64
        $region63: #{tpu_custom_call.1} parent=59 // pred_region
          %s2556 = sand.u32 %s162, 1
          %s2557 = scalar_lea.sflag [#allocation4], %s2556
          %s2558 = sand.u32 %s162, 1
          %s2559 = smul.addr %s2558, 128
          %s2560 = scalar_lea.vmem [#allocation7], %s2559
          %2561 = dma.done %s2557, 2048
        $region64: #{tpu_custom_call.1} parent=59 // pred_fallthru
          _
      $region60: #{tpu_custom_call.1} parent=5 // pred_fallthru
        _
    $region6: #{tpu_custom_call.1} parent=1 // loop_footer
      %s21 = sadd.s32 1, %s17
    $region7: #{tpu_custom_call.1} parent=1 // loop_footer_branch
      %16 = sbr.rel target = $region3
    $region8: #{tpu_custom_call.1} parent=1 // loop_exit
      _
    %2562 = vsyncpa [#allocation3], 1
    %s2563 = scalar_lea.sflag [#allocation3], 1
    %2564 = vsyncpa %s2563, 1
    %2565 = vsyncpa [#allocation6], 1
    %2566 = vsyncpa [#allocation4], 1
    %s2567 = scalar_lea.sflag [#allocation4], 1
    %2568 = vsyncpa %s2567, 1

</llo_original>
